<compile_context>
chip_gen: v7x
topology: tpu7x:2x2x1
jax: 0.10.0
libtpu: 0.0.40
codegen_flags: <defaults>
</compile_context>

<pallas_src>
import functools

import jax
import jax.numpy as jnp
from jax import lax
from jax.experimental import pallas as pl
from jax.experimental.pallas import tpu as pltpu


def _round_up(x, m):
    return ((x + m - 1) // m) * m


# ---------------------------------------------------------------------------
# Fused LSTM kernel: per-chunk input projection + serial recurrence + final FC
# ---------------------------------------------------------------------------
def _lstm_fused_kernel(T, TCHUNK, H_pad, mask_needed,
                       x_ref, wih_ref, b_ref, whh_ref, wfc_ref, bfc_ref,
                       out_ref, h_ref, c_ref, xp_ref):
    t_chunk = pl.program_id(1)
    BB = h_ref.shape[0]

    @pl.when(t_chunk == 0)
    def _init():
        h_ref[...] = jnp.zeros_like(h_ref)
        c_ref[...] = jnp.zeros_like(c_ref)

    # Chunk-wide input projection: one (TCHUNK*BB, I) @ (I, 4*H_pad) matmul.
    # Pipelines ahead of the serial gate math; accumulate + bias in f32.
    xp_ref[...] = (jnp.dot(x_ref[...], wih_ref[...],
                           preferred_element_type=jnp.float32)
                   + b_ref[...])

    def step(k, carry):
        h, c = carry
        hb = h.astype(jnp.bfloat16)
        row = pl.multiple_of(k * BB, BB)
        # Single fused gate matmul per timestep (N = 4*H_pad fills the MXU).
        gates = (xp_ref[pl.ds(row, BB), :]
                 + jnp.dot(hb, whh_ref[...], preferred_element_type=jnp.float32))
        i_g = jax.nn.sigmoid(gates[:, 0 * H_pad:1 * H_pad])
        f_g = jax.nn.sigmoid(gates[:, 1 * H_pad:2 * H_pad])
        g_g = jnp.tanh(gates[:, 2 * H_pad:3 * H_pad])
        o_g = jax.nn.sigmoid(gates[:, 3 * H_pad:4 * H_pad])
        c_new = f_g * c + i_g * g_g
        h_new = o_g * jnp.tanh(c_new)
        if mask_needed:   # only emitted when T % TCHUNK != 0 (static check)
            m = (t_chunk * TCHUNK + k < T).astype(jnp.float32)
            h_new = h + m * (h_new - h)
            c_new = c + m * (c_new - c)
        return h_new, c_new

    h, c = lax.fori_loop(0, TCHUNK, step, (h_ref[...], c_ref[...]), unroll=True)
    h_ref[...] = h
    c_ref[...] = c

    @pl.when(t_chunk == pl.num_programs(1) - 1)
    def _final():
        out_ref[...] = (jnp.dot(h.astype(jnp.bfloat16), wfc_ref[...],
                                preferred_element_type=jnp.float32)
                        + bfc_ref[...]).astype(out_ref.dtype)


# ---------------------------------------------------------------------------
# Wrapper: pack PyTorch-layout params, pad to TPU-friendly shapes, run kernel
# ---------------------------------------------------------------------------
def accent_recognition_forward(x, params, *, t_chunk=16, batch_block=None):
    """x: (B, T, I) float32; params in PyTorch layout -> logits (B, C)."""
    w_ih, w_hh, b_ih, b_hh, w_fc, b_fc = params
    B, T, I = x.shape
    H = w_hh.shape[1]
    C = w_fc.shape[0]

    H_pad = _round_up(H, 128)          # lane-aligned hidden
    C_pad = _round_up(C, 128)          # lane-dense classifier output
    G = 4 * H_pad                      # fused gate width

    TCHUNK = max(1, min(t_chunk, T))
    num_chunks = pl.cdiv(T, TCHUNK)
    T_pad = num_chunks * TCHUNK
    mask_needed = (T_pad != T)

    B_pad = _round_up(B, 8)
    if batch_block is None:
        # On v7x, pass batch_block = round_up(B/2, 8) to shard across both TCs.
        BB = min(B_pad, 128)
    else:
        BB = min(_round_up(batch_block, 8), 128)
    B_pad = _round_up(B_pad, BB)
    num_b = B_pad // BB

    # ---- fused, padded weights (gate order i, f, g, o) ----------------------
    def fuse(w, in_dim):               # (4H, in) -> (in, 4*H_pad), bf16
        w4 = jnp.transpose(w.reshape(4, H, in_dim), (2, 0, 1))    # (in, 4, H)
        w4 = jnp.pad(w4, ((0, 0), (0, 0), (0, H_pad - H)))
        return w4.reshape(in_dim, G).astype(jnp.bfloat16)

    wih_f = fuse(w_ih, I)                                          # (I, 4*H_pad)
    whh_f = jnp.pad(fuse(w_hh, H), ((0, H_pad - H), (0, 0)))       # (H_pad, 4*H_pad)
    b_f = jnp.pad((b_ih + b_hh).reshape(4, H),
                  ((0, 0), (0, H_pad - H))).reshape(1, G).astype(jnp.float32)
    wfc_p = jnp.pad(w_fc.T, ((0, H_pad - H), (0, C_pad - C))).astype(jnp.bfloat16)
    bfc_p = jnp.pad(b_fc.reshape(1, C), ((0, 0), (0, C_pad - C))).astype(jnp.float32)

    # ---- lay x out so each (batch block, time chunk) grid cell is one
    #      contiguous (TCHUNK*BB, I) slab: no in-kernel reshape, bf16 DMA ------
    xt = jnp.transpose(x, (1, 0, 2))                               # (T, B, I)
    xt = jnp.pad(xt, ((0, T_pad - T), (0, B_pad - B), (0, 0)))
    xt = xt.reshape(num_chunks, TCHUNK, num_b, BB, I)
    xt = jnp.transpose(xt, (2, 0, 1, 3, 4))          # (num_b, num_chunks, TCHUNK, BB, I)
    ROW = TCHUNK * BB
    x2d = xt.reshape(num_b * num_chunks * ROW, I).astype(jnp.bfloat16)

    # ---- explicit VMEM budget ------------------------------------------------
    vmem_bytes = (2 * ROW * I * 2                 # x slab, double-buffered bf16
                  + I * G * 2 + H_pad * G * 2     # fused W_ih, W_hh (bf16)
                  + H_pad * C_pad * 2             # W_fc (bf16)
                  + (G + C_pad) * 4               # biases (f32)
                  + ROW * G * 4                   # per-chunk projection scratch (f32)
                  + 2 * BB * H_pad * 4            # h, c scratch (f32)
                  + 2 * BB * C_pad * 4)           # output, double-buffered (f32)
    vmem_limit = int(min(max(2 * vmem_bytes, 32 << 20), 64 << 20))

    kernel = functools.partial(_lstm_fused_kernel, T, TCHUNK, H_pad, mask_needed)
    full = lambda shape: pl.BlockSpec(shape, lambda b, t: (0, 0))

    out_pad = pl.pallas_call(
        kernel,
        out_shape=jax.ShapeDtypeStruct((B_pad, C_pad), jnp.float32),
        grid_spec=pltpu.PrefetchScalarGridSpec(
            num_scalar_prefetch=0,
            grid=(num_b, num_chunks),
            in_specs=[
                pl.BlockSpec((ROW, I), lambda b, t: (b * num_chunks + t, 0)),
                full((I, G)),            # fused W_ih
                full((1, G)),            # fused gate bias
                full((H_pad, G)),        # fused W_hh
                full((H_pad, C_pad)),    # W_fc
                full((1, C_pad)),        # b_fc
            ],
            out_specs=pl.BlockSpec((BB, C_pad), lambda b, t: (b, 0)),
            scratch_shapes=[pltpu.VMEM((BB, H_pad), jnp.float32),   # h
                            pltpu.VMEM((BB, H_pad), jnp.float32),   # c
                            pltpu.VMEM((ROW, G), jnp.float32)],     # chunk x-projection
        ),
        compiler_params=pltpu.CompilerParams(
            dimension_semantics=("parallel", "arbitrary"),
            vmem_limit_bytes=vmem_limit),
    )(x2d, wih_f, b_f, whh_f, wfc_p, bfc_p)

    return out_pad[:B, :C]


# ---------------------------------------------------------------------------
# Params (PyTorch layout / init) and pure-JAX f32 reference
# ---------------------------------------------------------------------------
def init_params(key, input_size, hidden_size, num_classes):
    ks = jax.random.split(key, 6)
    bound = 1.0 / (hidden_size ** 0.5)
    u = lambda k, shape: jax.random.uniform(k, shape, jnp.float32, -bound, bound)
    w_ih = u(ks[0], (4 * hidden_size, input_size))
    w_hh = u(ks[1], (4 * hidden_size, hidden_size))
    b_ih = u(ks[2], (4 * hidden_size,))
    b_hh = u(ks[3], (4 * hidden_size,))
    w_fc = u(ks[4], (num_classes, hidden_size))
    b_fc = u(ks[5], (num_classes,))
    return (w_ih, w_hh, b_ih, b_hh, w_fc, b_fc)


def reference_forward(x, params):
    """Pure-JAX f32 reference matching nn.LSTM(batch_first=True) + nn.Linear."""
    w_ih, w_hh, b_ih, b_hh, w_fc, b_fc = params
    B, T, I = x.shape
    H = w_hh.shape[1]
    h = jnp.zeros((B, H), jnp.float32)
    c = jnp.zeros((B, H), jnp.float32)
    wih_t, whh_t = w_ih.T, w_hh.T
    b = (b_ih + b_hh).reshape(1, 4 * H)

    def step(carry, x_t):
        h, c = carry
        gates = x_t @ wih_t + h @ whh_t + b
        i_g = jax.nn.sigmoid(gates[:, 0 * H:1 * H])
        f_g = jax.nn.sigmoid(gates[:, 1 * H:2 * H])
        g_g = jnp.tanh(gates[:, 2 * H:3 * H])
        o_g = jax.nn.sigmoid(gates[:, 3 * H:4 * H])
        c_new = f_g * c + i_g * g_g
        h_new = o_g * jnp.tanh(c_new)
        return (h_new, c_new), None

    (h, _), _ = lax.scan(step, (h, c), jnp.transpose(x, (1, 0, 2)))
    return h @ w_fc.T + b_fc.reshape(1, -1)


if __name__ == "__main__":
    batch, seq, input_size, hidden_size, num_classes = 2, 8, 16, 32, 4

    key = jax.random.PRNGKey(0)
    kx, kp = jax.random.split(key)
    x = jax.random.normal(kx, (batch, seq, input_size), jnp.float32)
    params = init_params(kp, input_size, hidden_size, num_classes)

    out = accent_recognition_forward(x, params)
    out = jax.block_until_ready(out)

    ref = reference_forward(x, params)
    assert out.shape == (batch, num_classes)
    # bf16 MXU operands with f32 accumulation => loosened tolerance vs f32 ref.
    assert jnp.allclose(out, ref, atol=2e-2, rtol=2e-2), (out, ref)

    print("KERNEL_OK")
</pallas_src>

<mosaic_0001>
module attributes {stable_mosaic.version = 11 : i64} {
  func.func @_lstm_fused_kernel(%arg0: i32, %arg1: i32, %arg2: memref<64x16xbf16, #tpu.memory_space<vmem>>, %arg3: memref<16x512xbf16, #tpu.memory_space<vmem>>, %arg4: memref<1x512xf32, #tpu.memory_space<vmem>>, %arg5: memref<128x512xbf16, #tpu.memory_space<vmem>>, %arg6: memref<128x128xbf16, #tpu.memory_space<vmem>>, %arg7: memref<1x128xf32, #tpu.memory_space<vmem>>, %arg8: memref<8x128xf32, #tpu.memory_space<vmem>>, %arg9: memref<8x128xf32, #tpu.memory_space<vmem>>, %arg10: memref<8x128xf32, #tpu.memory_space<vmem>>, %arg11: memref<64x512xf32, #tpu.memory_space<vmem>>) attributes {dimension_semantics = [#tpu.dimension_semantics<parallel>, #tpu.dimension_semantics<arbitrary>], iteration_bounds = array<i64: 1, 1>, scalar_prefetch = 0 : i64, scratch_operands = 3 : i64, tpu.core_type = #tpu.core_type<tc>, window_params = [{transform_indices = @transform_0, window_bounds = array<i64: 64, 16>}, {pipeline_mode = #tpu.pipeline_mode<synchronous>, transform_indices = @transform_1, window_bounds = array<i64: 16, 512>}, {pipeline_mode = #tpu.pipeline_mode<synchronous>, transform_indices = @transform_2, window_bounds = array<i64: 1, 512>}, {pipeline_mode = #tpu.pipeline_mode<synchronous>, transform_indices = @transform_3, window_bounds = array<i64: 128, 512>}, {pipeline_mode = #tpu.pipeline_mode<synchronous>, transform_indices = @transform_4, window_bounds = array<i64: 128, 128>}, {pipeline_mode = #tpu.pipeline_mode<synchronous>, transform_indices = @transform_5, window_bounds = array<i64: 1, 128>}, {transform_indices = @transform_6, window_bounds = array<i64: 8, 128>}]} {
    %c0_i32 = arith.constant 0 : i32
    %0 = arith.cmpi eq, %arg1, %c0_i32 : i32
    %1 = arith.extui %0 : i1 to i32
    %c0_i32_0 = arith.constant 0 : i32
    %2 = arith.cmpi ne, %1, %c0_i32_0 : i32
    scf.if %2 {
      %cst_83 = arith.constant 0.000000e+00 : f32
      %281 = vector.broadcast %cst_83 : f32 to vector<8x128xf32>
      %c0_84 = arith.constant 0 : index
      %c0_85 = arith.constant 0 : index
      %282 = vector.load %arg9[%c0_84, %c0_85] : memref<8x128xf32, #tpu.memory_space<vmem>>, vector<8x128xf32>
      tpu.vector_store %arg9[%c0_84, %c0_85], %281 {strides = array<i32>} : memref<8x128xf32, #tpu.memory_space<vmem>>, vector<8x128xf32>,
      %cst_86 = arith.constant 0.000000e+00 : f32
      %283 = vector.broadcast %cst_86 : f32 to vector<8x128xf32>
      %c0_87 = arith.constant 0 : index
      %c0_88 = arith.constant 0 : index
      %284 = vector.load %arg10[%c0_87, %c0_88] : memref<8x128xf32, #tpu.memory_space<vmem>>, vector<8x128xf32>
      tpu.vector_store %arg10[%c0_87, %c0_88], %283 {strides = array<i32>} : memref<8x128xf32, #tpu.memory_space<vmem>>, vector<8x128xf32>,
    } else {
    }
    %c0 = arith.constant 0 : index
    %c0_1 = arith.constant 0 : index
    %3 = vector.load %arg2[%c0, %c0_1] : memref<64x16xbf16, #tpu.memory_space<vmem>>, vector<64x16xbf16>
    %c0_2 = arith.constant 0 : index
    %c0_3 = arith.constant 0 : index
    %4 = vector.load %arg3[%c0_2, %c0_3] : memref<16x512xbf16, #tpu.memory_space<vmem>>, vector<16x512xbf16>
    %cst = arith.constant dense<0.000000e+00> : vector<64x512xf32>
    %5 = tpu.matmul %3, %4, %cst {dimension_numbers = #tpu.dot_dimension_numbers<[1], [0], [0], [1], [0, 0, 1, 1], [], []>} : vector<64x16xbf16>, vector<16x512xbf16>, vector<64x512xf32> -> vector<64x512xf32>
    %c0_4 = arith.constant 0 : index
    %c0_5 = arith.constant 0 : index
    %6 = vector.load %arg4[%c0_4, %c0_5] : memref<1x512xf32, #tpu.memory_space<vmem>>, vector<1x512xf32>
    %7 = vector.broadcast %6 : vector<1x512xf32> to vector<64x512xf32>
    %8 = arith.addf %5, %7 : vector<64x512xf32>
    %c0_6 = arith.constant 0 : index
    %c0_7 = arith.constant 0 : index
    %9 = vector.load %arg11[%c0_6, %c0_7] : memref<64x512xf32, #tpu.memory_space<vmem>>, vector<64x512xf32>
    tpu.vector_store %arg11[%c0_6, %c0_7], %8 {strides = array<i32>} : memref<64x512xf32, #tpu.memory_space<vmem>>, vector<64x512xf32>,
    %c0_8 = arith.constant 0 : index
    %c0_9 = arith.constant 0 : index
    %10 = vector.load %arg9[%c0_8, %c0_9] : memref<8x128xf32, #tpu.memory_space<vmem>>, vector<8x128xf32>
    %c0_10 = arith.constant 0 : index
    %c0_11 = arith.constant 0 : index
    %11 = vector.load %arg10[%c0_10, %c0_11] : memref<8x128xf32, #tpu.memory_space<vmem>>, vector<8x128xf32>
    %c0_i32_12 = arith.constant 0 : i32
    %12 = arith.truncf %10 : vector<8x128xf32> to vector<8x128xbf16>
    %c8_i32 = arith.constant 8 : i32
    %13 = arith.muli %c0_i32_12, %c8_i32 : i32
    %14 = tpu.assume_multiple %13, 8 : i32
    %15 = arith.index_cast %14 : i32 to index
    %c0_13 = arith.constant 0 : index
    %16 = vector.load %arg11[%15, %c0_13] : memref<64x512xf32, #tpu.memory_space<vmem>>, vector<8x512xf32>
    %c0_14 = arith.constant 0 : index
    %c0_15 = arith.constant 0 : index
    %17 = vector.load %arg5[%c0_14, %c0_15] : memref<128x512xbf16, #tpu.memory_space<vmem>>, vector<128x512xbf16>
    %cst_16 = arith.constant dense<0.000000e+00> : vector<8x512xf32>
    %18 = tpu.matmul %12, %17, %cst_16 {dimension_numbers = #tpu.dot_dimension_numbers<[1], [0], [0], [1], [0, 0, 1, 1], [], []>} : vector<8x128xbf16>, vector<128x512xbf16>, vector<8x512xf32> -> vector<8x512xf32>
    %19 = arith.addf %16, %18 : vector<8x512xf32>
    %20 = vector.extract_strided_slice %19 {offsets = [0, 0], sizes = [8, 128], strides = [1, 1]} : vector<8x512xf32> to vector<8x128xf32>
    %21 = arith.negf %20 : vector<8x128xf32>
    %22 = math.exp %21 : vector<8x128xf32>
    %cst_17 = arith.constant 1.000000e+00 : f32
    %23 = vector.broadcast %cst_17 : f32 to vector<8x128xf32>
    %24 = arith.addf %23, %22 : vector<8x128xf32>
    %25 = arith.divf %23, %24 : vector<8x128xf32>
    %26 = vector.extract_strided_slice %19 {offsets = [0, 128], sizes = [8, 128], strides = [1, 1]} : vector<8x512xf32> to vector<8x128xf32>
    %27 = arith.negf %26 : vector<8x128xf32>
    %28 = math.exp %27 : vector<8x128xf32>
    %cst_18 = arith.constant 1.000000e+00 : f32
    %29 = vector.broadcast %cst_18 : f32 to vector<8x128xf32>
    %30 = arith.addf %29, %28 : vector<8x128xf32>
    %31 = arith.divf %29, %30 : vector<8x128xf32>
    %32 = vector.extract_strided_slice %19 {offsets = [0, 256], sizes = [8, 128], strides = [1, 1]} : vector<8x512xf32> to vector<8x128xf32>
    %33 = math.tanh %32 : vector<8x128xf32>
    %34 = vector.extract_strided_slice %19 {offsets = [0, 384], sizes = [8, 128], strides = [1, 1]} : vector<8x512xf32> to vector<8x128xf32>
    %35 = arith.negf %34 : vector<8x128xf32>
    %36 = math.exp %35 : vector<8x128xf32>
    %cst_19 = arith.constant 1.000000e+00 : f32
    %37 = vector.broadcast %cst_19 : f32 to vector<8x128xf32>
    %38 = arith.addf %37, %36 : vector<8x128xf32>
    %39 = arith.divf %37, %38 : vector<8x128xf32>
    %40 = arith.mulf %31, %11 : vector<8x128xf32>
    %41 = arith.mulf %25, %33 : vector<8x128xf32>
    %42 = arith.addf %40, %41 : vector<8x128xf32>
    %43 = math.tanh %42 : vector<8x128xf32>
    %44 = arith.mulf %39, %43 : vector<8x128xf32>
    %c1_i32 = arith.constant 1 : i32
    %45 = arith.truncf %44 : vector<8x128xf32> to vector<8x128xbf16>
    %c8_i32_20 = arith.constant 8 : i32
    %46 = arith.muli %c1_i32, %c8_i32_20 : i32
    %47 = tpu.assume_multiple %46, 8 : i32
    %48 = arith.index_cast %47 : i32 to index
    %c0_21 = arith.constant 0 : index
    %49 = vector.load %arg11[%48, %c0_21] : memref<64x512xf32, #tpu.memory_space<vmem>>, vector<8x512xf32>
    %c0_22 = arith.constant 0 : index
    %c0_23 = arith.constant 0 : index
    %50 = vector.load %arg5[%c0_22, %c0_23] : memref<128x512xbf16, #tpu.memory_space<vmem>>, vector<128x512xbf16>
    %cst_24 = arith.constant dense<0.000000e+00> : vector<8x512xf32>
    %51 = tpu.matmul %45, %50, %cst_24 {dimension_numbers = #tpu.dot_dimension_numbers<[1], [0], [0], [1], [0, 0, 1, 1], [], []>} : vector<8x128xbf16>, vector<128x512xbf16>, vector<8x512xf32> -> vector<8x512xf32>
    %52 = arith.addf %49, %51 : vector<8x512xf32>
    %53 = vector.extract_strided_slice %52 {offsets = [0, 0], sizes = [8, 128], strides = [1, 1]} : vector<8x512xf32> to vector<8x128xf32>
    %54 = arith.negf %53 : vector<8x128xf32>
    %55 = math.exp %54 : vector<8x128xf32>
    %cst_25 = arith.constant 1.000000e+00 : f32
    %56 = vector.broadcast %cst_25 : f32 to vector<8x128xf32>
    %57 = arith.addf %56, %55 : vector<8x128xf32>
    %58 = arith.divf %56, %57 : vector<8x128xf32>
    %59 = vector.extract_strided_slice %52 {offsets = [0, 128], sizes = [8, 128], strides = [1, 1]} : vector<8x512xf32> to vector<8x128xf32>
    %60 = arith.negf %59 : vector<8x128xf32>
    %61 = math.exp %60 : vector<8x128xf32>
    %cst_26 = arith.constant 1.000000e+00 : f32
    %62 = vector.broadcast %cst_26 : f32 to vector<8x128xf32>
    %63 = arith.addf %62, %61 : vector<8x128xf32>
    %64 = arith.divf %62, %63 : vector<8x128xf32>
    %65 = vector.extract_strided_slice %52 {offsets = [0, 256], sizes = [8, 128], strides = [1, 1]} : vector<8x512xf32> to vector<8x128xf32>
    %66 = math.tanh %65 : vector<8x128xf32>
    %67 = vector.extract_strided_slice %52 {offsets = [0, 384], sizes = [8, 128], strides = [1, 1]} : vector<8x512xf32> to vector<8x128xf32>
    %68 = arith.negf %67 : vector<8x128xf32>
    %69 = math.exp %68 : vector<8x128xf32>
    %cst_27 = arith.constant 1.000000e+00 : f32
    %70 = vector.broadcast %cst_27 : f32 to vector<8x128xf32>
    %71 = arith.addf %70, %69 : vector<8x128xf32>
    %72 = arith.divf %70, %71 : vector<8x128xf32>
    %73 = arith.mulf %64, %42 : vector<8x128xf32>
    %74 = arith.mulf %58, %66 : vector<8x128xf32>
    %75 = arith.addf %73, %74 : vector<8x128xf32>
    %76 = math.tanh %75 : vector<8x128xf32>
    %77 = arith.mulf %72, %76 : vector<8x128xf32>
    %c2_i32 = arith.constant 2 : i32
    %78 = arith.truncf %77 : vector<8x128xf32> to vector<8x128xbf16>
    %c8_i32_28 = arith.constant 8 : i32
    %79 = arith.muli %c2_i32, %c8_i32_28 : i32
    %80 = tpu.assume_multiple %79, 8 : i32
    %81 = arith.index_cast %80 : i32 to index
    %c0_29 = arith.constant 0 : index
    %82 = vector.load %arg11[%81, %c0_29] : memref<64x512xf32, #tpu.memory_space<vmem>>, vector<8x512xf32>
    %c0_30 = arith.constant 0 : index
    %c0_31 = arith.constant 0 : index
    %83 = vector.load %arg5[%c0_30, %c0_31] : memref<128x512xbf16, #tpu.memory_space<vmem>>, vector<128x512xbf16>
    %cst_32 = arith.constant dense<0.000000e+00> : vector<8x512xf32>
    %84 = tpu.matmul %78, %83, %cst_32 {dimension_numbers = #tpu.dot_dimension_numbers<[1], [0], [0], [1], [0, 0, 1, 1], [], []>} : vector<8x128xbf16>, vector<128x512xbf16>, vector<8x512xf32> -> vector<8x512xf32>
    %85 = arith.addf %82, %84 : vector<8x512xf32>
    %86 = vector.extract_strided_slice %85 {offsets = [0, 0], sizes = [8, 128], strides = [1, 1]} : vector<8x512xf32> to vector<8x128xf32>
    %87 = arith.negf %86 : vector<8x128xf32>
    %88 = math.exp %87 : vector<8x128xf32>
    %cst_33 = arith.constant 1.000000e+00 : f32
    %89 = vector.broadcast %cst_33 : f32 to vector<8x128xf32>
    %90 = arith.addf %89, %88 : vector<8x128xf32>
    %91 = arith.divf %89, %90 : vector<8x128xf32>
    %92 = vector.extract_strided_slice %85 {offsets = [0, 128], sizes = [8, 128], strides = [1, 1]} : vector<8x512xf32> to vector<8x128xf32>
    %93 = arith.negf %92 : vector<8x128xf32>
    %94 = math.exp %93 : vector<8x128xf32>
    %cst_34 = arith.constant 1.000000e+00 : f32
    %95 = vector.broadcast %cst_34 : f32 to vector<8x128xf32>
    %96 = arith.addf %95, %94 : vector<8x128xf32>
    %97 = arith.divf %95, %96 : vector<8x128xf32>
    %98 = vector.extract_strided_slice %85 {offsets = [0, 256], sizes = [8, 128], strides = [1, 1]} : vector<8x512xf32> to vector<8x128xf32>
    %99 = math.tanh %98 : vector<8x128xf32>
    %100 = vector.extract_strided_slice %85 {offsets = [0, 384], sizes = [8, 128], strides = [1, 1]} : vector<8x512xf32> to vector<8x128xf32>
    %101 = arith.negf %100 : vector<8x128xf32>
    %102 = math.exp %101 : vector<8x128xf32>
    %cst_35 = arith.constant 1.000000e+00 : f32
    %103 = vector.broadcast %cst_35 : f32 to vector<8x128xf32>
    %104 = arith.addf %103, %102 : vector<8x128xf32>
    %105 = arith.divf %103, %104 : vector<8x128xf32>
    %106 = arith.mulf %97, %75 : vector<8x128xf32>
    %107 = arith.mulf %91, %99 : vector<8x128xf32>
    %108 = arith.addf %106, %107 : vector<8x128xf32>
    %109 = math.tanh %108 : vector<8x128xf32>
    %110 = arith.mulf %105, %109 : vector<8x128xf32>
    %c3_i32 = arith.constant 3 : i32
    %111 = arith.truncf %110 : vector<8x128xf32> to vector<8x128xbf16>
    %c8_i32_36 = arith.constant 8 : i32
    %112 = arith.muli %c3_i32, %c8_i32_36 : i32
    %113 = tpu.assume_multiple %112, 8 : i32
    %114 = arith.index_cast %113 : i32 to index
    %c0_37 = arith.constant 0 : index
    %115 = vector.load %arg11[%114, %c0_37] : memref<64x512xf32, #tpu.memory_space<vmem>>, vector<8x512xf32>
    %c0_38 = arith.constant 0 : index
    %c0_39 = arith.constant 0 : index
    %116 = vector.load %arg5[%c0_38, %c0_39] : memref<128x512xbf16, #tpu.memory_space<vmem>>, vector<128x512xbf16>
    %cst_40 = arith.constant dense<0.000000e+00> : vector<8x512xf32>
    %117 = tpu.matmul %111, %116, %cst_40 {dimension_numbers = #tpu.dot_dimension_numbers<[1], [0], [0], [1], [0, 0, 1, 1], [], []>} : vector<8x128xbf16>, vector<128x512xbf16>, vector<8x512xf32> -> vector<8x512xf32>
    %118 = arith.addf %115, %117 : vector<8x512xf32>
    %119 = vector.extract_strided_slice %118 {offsets = [0, 0], sizes = [8, 128], strides = [1, 1]} : vector<8x512xf32> to vector<8x128xf32>
    %120 = arith.negf %119 : vector<8x128xf32>
    %121 = math.exp %120 : vector<8x128xf32>
    %cst_41 = arith.constant 1.000000e+00 : f32
    %122 = vector.broadcast %cst_41 : f32 to vector<8x128xf32>
    %123 = arith.addf %122, %121 : vector<8x128xf32>
    %124 = arith.divf %122, %123 : vector<8x128xf32>
    %125 = vector.extract_strided_slice %118 {offsets = [0, 128], sizes = [8, 128], strides = [1, 1]} : vector<8x512xf32> to vector<8x128xf32>
    %126 = arith.negf %125 : vector<8x128xf32>
    %127 = math.exp %126 : vector<8x128xf32>
    %cst_42 = arith.constant 1.000000e+00 : f32
    %128 = vector.broadcast %cst_42 : f32 to vector<8x128xf32>
    %129 = arith.addf %128, %127 : vector<8x128xf32>
    %130 = arith.divf %128, %129 : vector<8x128xf32>
    %131 = vector.extract_strided_slice %118 {offsets = [0, 256], sizes = [8, 128], strides = [1, 1]} : vector<8x512xf32> to vector<8x128xf32>
    %132 = math.tanh %131 : vector<8x128xf32>
    %133 = vector.extract_strided_slice %118 {offsets = [0, 384], sizes = [8, 128], strides = [1, 1]} : vector<8x512xf32> to vector<8x128xf32>
    %134 = arith.negf %133 : vector<8x128xf32>
    %135 = math.exp %134 : vector<8x128xf32>
    %cst_43 = arith.constant 1.000000e+00 : f32
    %136 = vector.broadcast %cst_43 : f32 to vector<8x128xf32>
    %137 = arith.addf %136, %135 : vector<8x128xf32>
    %138 = arith.divf %136, %137 : vector<8x128xf32>
    %139 = arith.mulf %130, %108 : vector<8x128xf32>
    %140 = arith.mulf %124, %132 : vector<8x128xf32>
    %141 = arith.addf %139, %140 : vector<8x128xf32>
    %142 = math.tanh %141 : vector<8x128xf32>
    %143 = arith.mulf %138, %142 : vector<8x128xf32>
    %c4_i32 = arith.constant 4 : i32
    %144 = arith.truncf %143 : vector<8x128xf32> to vector<8x128xbf16>
    %c8_i32_44 = arith.constant 8 : i32
    %145 = arith.muli %c4_i32, %c8_i32_44 : i32
    %146 = tpu.assume_multiple %145, 8 : i32
    %147 = arith.index_cast %146 : i32 to index
    %c0_45 = arith.constant 0 : index
    %148 = vector.load %arg11[%147, %c0_45] : memref<64x512xf32, #tpu.memory_space<vmem>>, vector<8x512xf32>
    %c0_46 = arith.constant 0 : index
    %c0_47 = arith.constant 0 : index
    %149 = vector.load %arg5[%c0_46, %c0_47] : memref<128x512xbf16, #tpu.memory_space<vmem>>, vector<128x512xbf16>
    %cst_48 = arith.constant dense<0.000000e+00> : vector<8x512xf32>
    %150 = tpu.matmul %144, %149, %cst_48 {dimension_numbers = #tpu.dot_dimension_numbers<[1], [0], [0], [1], [0, 0, 1, 1], [], []>} : vector<8x128xbf16>, vector<128x512xbf16>, vector<8x512xf32> -> vector<8x512xf32>
    %151 = arith.addf %148, %150 : vector<8x512xf32>
    %152 = vector.extract_strided_slice %151 {offsets = [0, 0], sizes = [8, 128], strides = [1, 1]} : vector<8x512xf32> to vector<8x128xf32>
    %153 = arith.negf %152 : vector<8x128xf32>
    %154 = math.exp %153 : vector<8x128xf32>
    %cst_49 = arith.constant 1.000000e+00 : f32
    %155 = vector.broadcast %cst_49 : f32 to vector<8x128xf32>
    %156 = arith.addf %155, %154 : vector<8x128xf32>
    %157 = arith.divf %155, %156 : vector<8x128xf32>
    %158 = vector.extract_strided_slice %151 {offsets = [0, 128], sizes = [8, 128], strides = [1, 1]} : vector<8x512xf32> to vector<8x128xf32>
    %159 = arith.negf %158 : vector<8x128xf32>
    %160 = math.exp %159 : vector<8x128xf32>
    %cst_50 = arith.constant 1.000000e+00 : f32
    %161 = vector.broadcast %cst_50 : f32 to vector<8x128xf32>
    %162 = arith.addf %161, %160 : vector<8x128xf32>
    %163 = arith.divf %161, %162 : vector<8x128xf32>
    %164 = vector.extract_strided_slice %151 {offsets = [0, 256], sizes = [8, 128], strides = [1, 1]} : vector<8x512xf32> to vector<8x128xf32>
    %165 = math.tanh %164 : vector<8x128xf32>
    %166 = vector.extract_strided_slice %151 {offsets = [0, 384], sizes = [8, 128], strides = [1, 1]} : vector<8x512xf32> to vector<8x128xf32>
    %167 = arith.negf %166 : vector<8x128xf32>
    %168 = math.exp %167 : vector<8x128xf32>
    %cst_51 = arith.constant 1.000000e+00 : f32
    %169 = vector.broadcast %cst_51 : f32 to vector<8x128xf32>
    %170 = arith.addf %169, %168 : vector<8x128xf32>
    %171 = arith.divf %169, %170 : vector<8x128xf32>
    %172 = arith.mulf %163, %141 : vector<8x128xf32>
    %173 = arith.mulf %157, %165 : vector<8x128xf32>
    %174 = arith.addf %172, %173 : vector<8x128xf32>
    %175 = math.tanh %174 : vector<8x128xf32>
    %176 = arith.mulf %171, %175 : vector<8x128xf32>
    %c5_i32 = arith.constant 5 : i32
    %177 = arith.truncf %176 : vector<8x128xf32> to vector<8x128xbf16>
    %c8_i32_52 = arith.constant 8 : i32
    %178 = arith.muli %c5_i32, %c8_i32_52 : i32
    %179 = tpu.assume_multiple %178, 8 : i32
    %180 = arith.index_cast %179 : i32 to index
    %c0_53 = arith.constant 0 : index
    %181 = vector.load %arg11[%180, %c0_53] : memref<64x512xf32, #tpu.memory_space<vmem>>, vector<8x512xf32>
    %c0_54 = arith.constant 0 : index
    %c0_55 = arith.constant 0 : index
    %182 = vector.load %arg5[%c0_54, %c0_55] : memref<128x512xbf16, #tpu.memory_space<vmem>>, vector<128x512xbf16>
    %cst_56 = arith.constant dense<0.000000e+00> : vector<8x512xf32>
    %183 = tpu.matmul %177, %182, %cst_56 {dimension_numbers = #tpu.dot_dimension_numbers<[1], [0], [0], [1], [0, 0, 1, 1], [], []>} : vector<8x128xbf16>, vector<128x512xbf16>, vector<8x512xf32> -> vector<8x512xf32>
    %184 = arith.addf %181, %183 : vector<8x512xf32>
    %185 = vector.extract_strided_slice %184 {offsets = [0, 0], sizes = [8, 128], strides = [1, 1]} : vector<8x512xf32> to vector<8x128xf32>
    %186 = arith.negf %185 : vector<8x128xf32>
    %187 = math.exp %186 : vector<8x128xf32>
    %cst_57 = arith.constant 1.000000e+00 : f32
    %188 = vector.broadcast %cst_57 : f32 to vector<8x128xf32>
    %189 = arith.addf %188, %187 : vector<8x128xf32>
    %190 = arith.divf %188, %189 : vector<8x128xf32>
    %191 = vector.extract_strided_slice %184 {offsets = [0, 128], sizes = [8, 128], strides = [1, 1]} : vector<8x512xf32> to vector<8x128xf32>
    %192 = arith.negf %191 : vector<8x128xf32>
    %193 = math.exp %192 : vector<8x128xf32>
    %cst_58 = arith.constant 1.000000e+00 : f32
    %194 = vector.broadcast %cst_58 : f32 to vector<8x128xf32>
    %195 = arith.addf %194, %193 : vector<8x128xf32>
    %196 = arith.divf %194, %195 : vector<8x128xf32>
    %197 = vector.extract_strided_slice %184 {offsets = [0, 256], sizes = [8, 128], strides = [1, 1]} : vector<8x512xf32> to vector<8x128xf32>
    %198 = math.tanh %197 : vector<8x128xf32>
    %199 = vector.extract_strided_slice %184 {offsets = [0, 384], sizes = [8, 128], strides = [1, 1]} : vector<8x512xf32> to vector<8x128xf32>
    %200 = arith.negf %199 : vector<8x128xf32>
    %201 = math.exp %200 : vector<8x128xf32>
    %cst_59 = arith.constant 1.000000e+00 : f32
    %202 = vector.broadcast %cst_59 : f32 to vector<8x128xf32>
    %203 = arith.addf %202, %201 : vector<8x128xf32>
    %204 = arith.divf %202, %203 : vector<8x128xf32>
    %205 = arith.mulf %196, %174 : vector<8x128xf32>
    %206 = arith.mulf %190, %198 : vector<8x128xf32>
    %207 = arith.addf %205, %206 : vector<8x128xf32>
    %208 = math.tanh %207 : vector<8x128xf32>
    %209 = arith.mulf %204, %208 : vector<8x128xf32>
    %c6_i32 = arith.constant 6 : i32
    %210 = arith.truncf %209 : vector<8x128xf32> to vector<8x128xbf16>
    %c8_i32_60 = arith.constant 8 : i32
    %211 = arith.muli %c6_i32, %c8_i32_60 : i32
    %212 = tpu.assume_multiple %211, 8 : i32
    %213 = arith.index_cast %212 : i32 to index
    %c0_61 = arith.constant 0 : index
    %214 = vector.load %arg11[%213, %c0_61] : memref<64x512xf32, #tpu.memory_space<vmem>>, vector<8x512xf32>
    %c0_62 = arith.constant 0 : index
    %c0_63 = arith.constant 0 : index
    %215 = vector.load %arg5[%c0_62, %c0_63] : memref<128x512xbf16, #tpu.memory_space<vmem>>, vector<128x512xbf16>
    %cst_64 = arith.constant dense<0.000000e+00> : vector<8x512xf32>
    %216 = tpu.matmul %210, %215, %cst_64 {dimension_numbers = #tpu.dot_dimension_numbers<[1], [0], [0], [1], [0, 0, 1, 1], [], []>} : vector<8x128xbf16>, vector<128x512xbf16>, vector<8x512xf32> -> vector<8x512xf32>
    %217 = arith.addf %214, %216 : vector<8x512xf32>
    %218 = vector.extract_strided_slice %217 {offsets = [0, 0], sizes = [8, 128], strides = [1, 1]} : vector<8x512xf32> to vector<8x128xf32>
    %219 = arith.negf %218 : vector<8x128xf32>
    %220 = math.exp %219 : vector<8x128xf32>
    %cst_65 = arith.constant 1.000000e+00 : f32
    %221 = vector.broadcast %cst_65 : f32 to vector<8x128xf32>
    %222 = arith.addf %221, %220 : vector<8x128xf32>
    %223 = arith.divf %221, %222 : vector<8x128xf32>
    %224 = vector.extract_strided_slice %217 {offsets = [0, 128], sizes = [8, 128], strides = [1, 1]} : vector<8x512xf32> to vector<8x128xf32>
    %225 = arith.negf %224 : vector<8x128xf32>
    %226 = math.exp %225 : vector<8x128xf32>
    %cst_66 = arith.constant 1.000000e+00 : f32
    %227 = vector.broadcast %cst_66 : f32 to vector<8x128xf32>
    %228 = arith.addf %227, %226 : vector<8x128xf32>
    %229 = arith.divf %227, %228 : vector<8x128xf32>
    %230 = vector.extract_strided_slice %217 {offsets = [0, 256], sizes = [8, 128], strides = [1, 1]} : vector<8x512xf32> to vector<8x128xf32>
    %231 = math.tanh %230 : vector<8x128xf32>
    %232 = vector.extract_strided_slice %217 {offsets = [0, 384], sizes = [8, 128], strides = [1, 1]} : vector<8x512xf32> to vector<8x128xf32>
    %233 = arith.negf %232 : vector<8x128xf32>
    %234 = math.exp %233 : vector<8x128xf32>
    %cst_67 = arith.constant 1.000000e+00 : f32
    %235 = vector.broadcast %cst_67 : f32 to vector<8x128xf32>
    %236 = arith.addf %235, %234 : vector<8x128xf32>
    %237 = arith.divf %235, %236 : vector<8x128xf32>
    %238 = arith.mulf %229, %207 : vector<8x128xf32>
    %239 = arith.mulf %223, %231 : vector<8x128xf32>
    %240 = arith.addf %238, %239 : vector<8x128xf32>
    %241 = math.tanh %240 : vector<8x128xf32>
    %242 = arith.mulf %237, %241 : vector<8x128xf32>
    %c7_i32 = arith.constant 7 : i32
    %243 = arith.truncf %242 : vector<8x128xf32> to vector<8x128xbf16>
    %c8_i32_68 = arith.constant 8 : i32
    %244 = arith.muli %c7_i32, %c8_i32_68 : i32
    %245 = tpu.assume_multiple %244, 8 : i32
    %246 = arith.index_cast %245 : i32 to index
    %c0_69 = arith.constant 0 : index
    %247 = vector.load %arg11[%246, %c0_69] : memref<64x512xf32, #tpu.memory_space<vmem>>, vector<8x512xf32>
    %c0_70 = arith.constant 0 : index
    %c0_71 = arith.constant 0 : index
    %248 = vector.load %arg5[%c0_70, %c0_71] : memref<128x512xbf16, #tpu.memory_space<vmem>>, vector<128x512xbf16>
    %cst_72 = arith.constant dense<0.000000e+00> : vector<8x512xf32>
    %249 = tpu.matmul %243, %248, %cst_72 {dimension_numbers = #tpu.dot_dimension_numbers<[1], [0], [0], [1], [0, 0, 1, 1], [], []>} : vector<8x128xbf16>, vector<128x512xbf16>, vector<8x512xf32> -> vector<8x512xf32>
    %250 = arith.addf %247, %249 : vector<8x512xf32>
    %251 = vector.extract_strided_slice %250 {offsets = [0, 0], sizes = [8, 128], strides = [1, 1]} : vector<8x512xf32> to vector<8x128xf32>
    %252 = arith.negf %251 : vector<8x128xf32>
    %253 = math.exp %252 : vector<8x128xf32>
    %cst_73 = arith.constant 1.000000e+00 : f32
    %254 = vector.broadcast %cst_73 : f32 to vector<8x128xf32>
    %255 = arith.addf %254, %253 : vector<8x128xf32>
    %256 = arith.divf %254, %255 : vector<8x128xf32>
    %257 = vector.extract_strided_slice %250 {offsets = [0, 128], sizes = [8, 128], strides = [1, 1]} : vector<8x512xf32> to vector<8x128xf32>
    %258 = arith.negf %257 : vector<8x128xf32>
    %259 = math.exp %258 : vector<8x128xf32>
    %cst_74 = arith.constant 1.000000e+00 : f32
    %260 = vector.broadcast %cst_74 : f32 to vector<8x128xf32>
    %261 = arith.addf %260, %259 : vector<8x128xf32>
    %262 = arith.divf %260, %261 : vector<8x128xf32>
    %263 = vector.extract_strided_slice %250 {offsets = [0, 256], sizes = [8, 128], strides = [1, 1]} : vector<8x512xf32> to vector<8x128xf32>
    %264 = math.tanh %263 : vector<8x128xf32>
    %265 = vector.extract_strided_slice %250 {offsets = [0, 384], sizes = [8, 128], strides = [1, 1]} : vector<8x512xf32> to vector<8x128xf32>
    %266 = arith.negf %265 : vector<8x128xf32>
    %267 = math.exp %266 : vector<8x128xf32>
    %cst_75 = arith.constant 1.000000e+00 : f32
    %268 = vector.broadcast %cst_75 : f32 to vector<8x128xf32>
    %269 = arith.addf %268, %267 : vector<8x128xf32>
    %270 = arith.divf %268, %269 : vector<8x128xf32>
    %271 = arith.mulf %262, %240 : vector<8x128xf32>
    %272 = arith.mulf %256, %264 : vector<8x128xf32>
    %273 = arith.addf %271, %272 : vector<8x128xf32>
    %274 = math.tanh %273 : vector<8x128xf32>
    %275 = arith.mulf %270, %274 : vector<8x128xf32>
    %c8_i32_76 = arith.constant 8 : i32
    %c0_77 = arith.constant 0 : index
    %c0_78 = arith.constant 0 : index
    %276 = vector.load %arg9[%c0_77, %c0_78] : memref<8x128xf32, #tpu.memory_space<vmem>>, vector<8x128xf32>
    tpu.vector_store %arg9[%c0_77, %c0_78], %275 {strides = array<i32>} : memref<8x128xf32, #tpu.memory_space<vmem>>, vector<8x128xf32>,
    %c0_79 = arith.constant 0 : index
    %c0_80 = arith.constant 0 : index
    %277 = vector.load %arg10[%c0_79, %c0_80] : memref<8x128xf32, #tpu.memory_space<vmem>>, vector<8x128xf32>
    tpu.vector_store %arg10[%c0_79, %c0_80], %273 {strides = array<i32>} : memref<8x128xf32, #tpu.memory_space<vmem>>, vector<8x128xf32>,
    %c0_i32_81 = arith.constant 0 : i32
    %278 = arith.cmpi eq, %arg1, %c0_i32_81 : i32
    %279 = arith.extui %278 : i1 to i32
    %c0_i32_82 = arith.constant 0 : i32
    %280 = arith.cmpi ne, %279, %c0_i32_82 : i32
    scf.if %280 {
      %281 = arith.truncf %275 : vector<8x128xf32> to vector<8x128xbf16>
      %c0_83 = arith.constant 0 : index
      %c0_84 = arith.constant 0 : index
      %282 = vector.load %arg6[%c0_83, %c0_84] : memref<128x128xbf16, #tpu.memory_space<vmem>>, vector<128x128xbf16>
      %cst_85 = arith.constant dense<0.000000e+00> : vector<8x128xf32>
      %283 = tpu.matmul %281, %282, %cst_85 {dimension_numbers = #tpu.dot_dimension_numbers<[1], [0], [0], [1], [0, 0, 1, 1], [], []>} : vector<8x128xbf16>, vector<128x128xbf16>, vector<8x128xf32> -> vector<8x128xf32>
      %c0_86 = arith.constant 0 : index
      %c0_87 = arith.constant 0 : index
      %284 = vector.load %arg7[%c0_86, %c0_87] : memref<1x128xf32, #tpu.memory_space<vmem>>, vector<1x128xf32>
      %285 = vector.broadcast %284 : vector<1x128xf32> to vector<8x128xf32>
      %286 = arith.addf %283, %285 : vector<8x128xf32>
      %c0_88 = arith.constant 0 : index
      %c0_89 = arith.constant 0 : index
      %287 = vector.load %arg8[%c0_88, %c0_89] : memref<8x128xf32, #tpu.memory_space<vmem>>, vector<8x128xf32>
      tpu.vector_store %arg8[%c0_88, %c0_89], %286 {strides = array<i32>} : memref<8x128xf32, #tpu.memory_space<vmem>>, vector<8x128xf32>,
    } else {
    }
    return
  }
  func.func @transform_0(%arg0: i32, %arg1: i32) -> (i32, i32) {
    %c1_i32 = arith.constant 1 : i32
    %0 = arith.muli %arg0, %c1_i32 : i32
    %1 = arith.addi %0, %arg1 : i32
    %c0_i32 = arith.constant 0 : i32
    %c0_i32_0 = arith.constant 0 : i32
    return %1, %c0_i32 : i32, i32
  }
  func.func @transform_1(%arg0: i32, %arg1: i32) -> (i32, i32) {
    %c0_i32 = arith.constant 0 : i32
    %c0_i32_0 = arith.constant 0 : i32
    %c0_i32_1 = arith.constant 0 : i32
    return %c0_i32, %c0_i32_0 : i32, i32
  }
  func.func @transform_2(%arg0: i32, %arg1: i32) -> (i32, i32) {
    %c0_i32 = arith.constant 0 : i32
    %c0_i32_0 = arith.constant 0 : i32
    %c0_i32_1 = arith.constant 0 : i32
    return %c0_i32, %c0_i32_0 : i32, i32
  }
  func.func @transform_3(%arg0: i32, %arg1: i32) -> (i32, i32) {
    %c0_i32 = arith.constant 0 : i32
    %c0_i32_0 = arith.constant 0 : i32
    %c0_i32_1 = arith.constant 0 : i32
    return %c0_i32, %c0_i32_0 : i32, i32
  }
  func.func @transform_4(%arg0: i32, %arg1: i32) -> (i32, i32) {
    %c0_i32 = arith.constant 0 : i32
    %c0_i32_0 = arith.constant 0 : i32
    %c0_i32_1 = arith.constant 0 : i32
    return %c0_i32, %c0_i32_0 : i32, i32
  }
  func.func @transform_5(%arg0: i32, %arg1: i32) -> (i32, i32) {
    %c0_i32 = arith.constant 0 : i32
    %c0_i32_0 = arith.constant 0 : i32
    %c0_i32_1 = arith.constant 0 : i32
    return %c0_i32, %c0_i32_0 : i32, i32
  }
  func.func @transform_6(%arg0: i32, %arg1: i32) -> (i32, i32) {
    %c0_i32 = arith.constant 0 : i32
    %c0_i32_0 = arith.constant 0 : i32
    return %arg0, %c0_i32 : i32, i32
  }
}

</mosaic_0001>

<llo_original>
// kernel: tpu_custom_call.1
$region0: #{tpu_custom_call.1}
  #allocation0 [shape = 'u32[]', space=smem, size = 0x4, offset = 0x4, fixed_abs, tag = 'smem constant byte address 0x4 - core index']
  #allocation1 [shape = 'u32[144,128]{1,0:T(1,128)}', space=vmem, size = 0x12000, scoped, tag = 'internal scratch']
  #allocation2 [shape = 'f32[8,128]{1,0:T(8,128)}', space=vmem, size = 0x1000, scoped, tag = 'scratch operand']
  #allocation3 [shape = 'f32[8,128]{1,0:T(8,128)}', space=vmem, size = 0x1000, scoped, tag = 'scratch operand']
  #allocation4 [shape = 'f32[64,512]{1,0:T(8,128)}', space=vmem, size = 0x20000, scoped, tag = 'scratch operand']
  %s0 = inlined_call_operand.vmem [shape: bf16[64,16], index: 0, kind: input, shape index: {}]
  %s1 = inlined_call_operand.vmem [shape: bf16[16,512], index: 1, kind: input, shape index: {}]
  %s2 = inlined_call_operand.vmem [shape: f32[1,512], index: 2, kind: input, shape index: {}]
  %s3 = inlined_call_operand.hbm [shape: bf16[128,512], index: 3, kind: input, shape index: {}]
  %s4 = inlined_call_operand.hbm [shape: bf16[128,128], index: 4, kind: input, shape index: {}]
  %s5 = inlined_call_operand.vmem [shape: f32[1,128], index: 5, kind: input, shape index: {}]
  %s6 = inlined_call_operand.hbm [shape: f32[8,128], index: 6, kind: output, shape index: {}]
  %s7 = sld [smem:[#allocation0]]
  $region50: #{tpu_custom_call.1} parent=0
    _
  %s9 = ssub.s32 1, %s7
  %s10 = scalar_select 0, %s9, %s7
  $region1: #{tpu_custom_call.1} parent=0
    #allocation5 [shape = 'u8[131072]{0}', space=vmem, size = 0x20000, scoped, tag = 'input window, operand 3, single buffered']
    #allocation6 [shape = 's32[1]{0}', space=sflag, size = 0x4, scoped, tag = 'scoped memory for tpu_custom_call.1']
    #allocation7 [shape = 's32[1]{0}', space=sflag, size = 0x4, scoped, tag = 'scoped memory for tpu_custom_call.1']
    #allocation8 [shape = 'u8[32768]{0}', space=vmem, size = 0x8000, scoped, tag = 'input window, operand 4, single buffered']
    #allocation9 [shape = 's32[1]{0}', space=sflag, size = 0x4, scoped, tag = 'scoped memory for tpu_custom_call.1']
    #allocation10 [shape = 'u8[4096]{0}', space=vmem, size = 0x1000, scoped, tag = 'output window, operand 0, single buffered']
    %11 = vsyncpa [#allocation6], 0
    %12 = vsyncpa [#allocation9], 0
    %13 = vsyncpa [#allocation7], 0
    // Predicated region
    $region2: #{tpu_custom_call.1} parent=1 // pred_check
      _
    $region3: #{tpu_custom_call.1} parent=1 // pred_check_branch
      %15 = sbr.rel (0) target = $region5
    $region4: #{tpu_custom_call.1} parent=1 // pred_region
      %s16 = sadd.s32 0, 0
      %s17 = smul.u32 8, %s16
      %p18 = scmp.lt.s32.totalorder %s17, 7
      %s19 = scalar_select %p18, %s17, 7
      %s20 = smul.addr %s19, 4
      %s21 = scalar_lea.vmem %s0, %s20
      %s22 = sadd.s32 0, 0
      %s23 = smul.u32 8, %s22
    $region5: #{tpu_custom_call.1} parent=1 // pred_fallthru
      _
    // Predicated region
    $region6: #{tpu_custom_call.1} parent=1 // pred_check
      _
    $region7: #{tpu_custom_call.1} parent=1 // pred_check_branch
      %25 = sbr.rel (0) target = $region9
    $region8: #{tpu_custom_call.1} parent=1 // pred_region
      _
    $region9: #{tpu_custom_call.1} parent=1 // pred_fallthru
      _
    // Predicated region
    $region10: #{tpu_custom_call.1} parent=1 // pred_check
      _
    $region11: #{tpu_custom_call.1} parent=1 // pred_check_branch
      %27 = sbr.rel (0) target = $region13
    $region12: #{tpu_custom_call.1} parent=1 // pred_region
      _
    $region13: #{tpu_custom_call.1} parent=1 // pred_fallthru
      _
    // Predicated region
    $region14: #{tpu_custom_call.1} parent=1 // pred_check
      _
    $region15: #{tpu_custom_call.1} parent=1 // pred_check_branch
      %29 = sbr.rel (0) target = $region17
    $region16: #{tpu_custom_call.1} parent=1 // pred_region
      %s31 = ssub.s32 4096, 4096
      %32 = vsyncadd [#allocation6], %s31
      %s33 = sshll.u32 [#allocation5], 4
      %s34 = int_to_ptr.vmem [resolvable:$true] %s33
      %39 = dma.hbm_to_vmem [thread:$0]  %s3, 4096, %s34, [#allocation6], 256, 256, 16
    $region17: #{tpu_custom_call.1} parent=1 // pred_fallthru
      _
    // Predicated region
    $region18: #{tpu_custom_call.1} parent=1 // pred_check
      _
    $region19: #{tpu_custom_call.1} parent=1 // pred_check_branch
      %41 = sbr.rel (0) target = $region21
    $region20: #{tpu_custom_call.1} parent=1 // pred_region
      %s43 = ssub.s32 1024, 1024
      %44 = vsyncadd [#allocation9], %s43
      %s45 = sshll.u32 [#allocation8], 4
      %s46 = int_to_ptr.vmem [resolvable:$true] %s45
      %51 = dma.hbm_to_vmem [thread:$0]  %s4, 1024, %s46, [#allocation9], 64, 64, 4
    $region21: #{tpu_custom_call.1} parent=1 // pred_fallthru
      _
    // Predicated region
    $region22: #{tpu_custom_call.1} parent=1 // pred_check
      _
    $region23: #{tpu_custom_call.1} parent=1 // pred_check_branch
      %53 = sbr.rel (0) target = $region25
    $region24: #{tpu_custom_call.1} parent=1 // pred_region
      _
    $region25: #{tpu_custom_call.1} parent=1 // pred_fallthru
      _
    // Predicated region
    $region26: #{tpu_custom_call.1} parent=1 // pred_check
      _
    $region27: #{tpu_custom_call.1} parent=1 // pred_check_branch
      %55 = sbr.rel (0) target = $region29
    $region28: #{tpu_custom_call.1} parent=1 // pred_region
      %56 = dma.done [#allocation6], 4096
    $region29: #{tpu_custom_call.1} parent=1 // pred_fallthru
      _
    // Predicated region
    $region30: #{tpu_custom_call.1} parent=1 // pred_check
      _
    $region31: #{tpu_custom_call.1} parent=1 // pred_check_branch
      %58 = sbr.rel (0) target = $region33
    $region32: #{tpu_custom_call.1} parent=1 // pred_region
      %59 = dma.done [#allocation9], 1024
    $region33: #{tpu_custom_call.1} parent=1 // pred_fallthru
      _
    %s60 = sadd.s32 0, 0
    %s61 = smul.u32 8, %s60
    %p62 = scmp.lt.s32.totalorder %s61, 7
    %s63 = scalar_select %p62, %s61, 7
    %s64 = smul.addr %s63, 4
    %s65 = scalar_lea.vmem %s0, %s64
    %s66 = sadd.s32 0, 0
    %s67 = smul.u32 8, %s66
    %p68 = scmp.lt.s32.totalorder %s67, 7
    %s69 = scalar_select %p68, %s67, 7
    %s70 = smul.addr %s69, 4
    %s71 = scalar_lea.vmem %s0, %s70
    %s72 = sadd.s32 0, 0
    %s73 = smul.u32 8, %s72
    %p75 = scmp.eq.s32.totalorder 0, 0
    // Predicated region
    $region34: #{tpu_custom_call.1} parent=1 // pred_check
      %p76 = pneg %p75
    $region35: #{tpu_custom_call.1} parent=1 // pred_check_branch
      %78 = sbr.rel (%p76) target = $region37
    $region36: #{tpu_custom_call.1} parent=1 // pred_region
      %79 = vst [vmem:[#allocation2] sm:$0xff] 0.0
      %80 = vst [vmem:[#allocation3] sm:$0xff] 0.0
    $region37: #{tpu_custom_call.1} parent=1 // pred_fallthru
      _
    %v81 = vld [vmem:[%s71] sm:$0xf]
    %v82 = vld [vmem:[%s71 + $0x4] sm:$0xf]
    %v83 = vld [vmem:[%s71 + $0x8] sm:$0xf]
    %v84 = vld [vmem:[%s71 + $0xc] sm:$0xf]
    %v85 = vld [vmem:[%s71 + $0x10] sm:$0xf]
    %v86 = vld [vmem:[%s71 + $0x14] sm:$0xf]
    %v87 = vld [vmem:[%s71 + $0x18] sm:$0xf]
    %v88 = vld [vmem:[%s71 + $0x1c] sm:$0xf]
    %v89 = vld [vmem:[%s1] sm:$0xff]
    %v90 = vld [vmem:[%s1 + $0x8] sm:$0xff]
    %v91 = vld [vmem:[%s1 + $0x10] sm:$0xff]
    %v92 = vld [vmem:[%s1 + $0x18] sm:$0xff]
    %v93 = vld [vmem:[%s2] sm:$0xf]
    %v95 = vlaneseq
    %v96 = vshrl.u32 %v95, 7
    %v97 = vsub.s32 0, %v96
    %v98 = vrot.slane %v93, %v97
    %v99 = vlaneseq
    %v100 = vshrl.u32 %v99, 7
    %v101 = vsub.s32 1, %v100
    %v102 = vrot.slane %v93, %v101
    %v103 = vlaneseq
    %v104 = vshrl.u32 %v103, 7
    %v105 = vsub.s32 2, %v104
    %v106 = vrot.slane %v93, %v105
    %v107 = vlaneseq
    %v108 = vshrl.u32 %v107, 7
    %v109 = vsub.s32 3, %v108
    %v110 = vrot.slane %v93, %v109
    %v123 = vunpack.c.l.b16 %v81
    %v124 = vunpack.c.l.b16 %v82
    %v125 = vunpack.c.l.b16 %v83
    %v126 = vunpack.c.l.b16 %v84
    %v127 = vunpack.c.l.b16 %v85
    %v128 = vunpack.c.l.b16 %v86
    %v129 = vunpack.c.l.b16 %v87
    %v130 = vunpack.c.l.b16 %v88
    %v131 = vpack.c.b16 %v124, %v123
    %v132 = vpack.c.b16 %v126, %v125
    %v133 = vpack.c.b16 %v128, %v127
    %v134 = vpack.c.b16 %v130, %v129
    %v139 = vunpack.c.l.b16 %v89
    %v140 = vunpack.c.h.b16 %v89
    %v141 = vunpack.c.l.b16 %v90
    %v142 = vunpack.c.h.b16 %v90
    %v143 = vunpack.c.l.b16 %v91
    %v144 = vunpack.c.h.b16 %v91
    %v145 = vunpack.c.l.b16 %v92
    %v146 = vunpack.c.h.b16 %v92
    %v147 = vpack.c.b16 %v143, %v139
    %v148 = vpack.c.b16 %v144, %v140
    %v149 = vpack.c.b16 %v145, %v141
    %v150 = vpack.c.b16 %v146, %v142
    %vm155 = vcmask 130048
    %v157 = vsel %vm155, %v131, 0
    %v160 = vsel %vm155, %v132, 0
    %v163 = vsel %vm155, %v133, 0
    %v166 = vsel %vm155, %v134, 0
    %168 = vmatprep.subr.bf16.mxu0 %v148
    %169 = vmatpush1.bf16.msra.mxu0 %v147
    %170 = vmatprep.subr.bf16.mxu0 0
    %171 = vmatpush1.bf16.msra.mxu0 0
    %172 = vmatprep.subr.bf16.mxu0 0
    %173 = vmatpush1.bf16.msra.mxu0 0
    %174 = vmatprep.subr.bf16.mxu0 0
    %175 = vmatpush1.bf16.msra.mxu0 0
    %176 = vmatprep.subr.bf16.mxu0 0
    %177 = vmatpush1.bf16.msra.mxu0 0
    %178 = vmatprep.subr.bf16.mxu0 0
    %179 = vmatpush1.bf16.msra.mxu0 0
    %180 = vmatprep.subr.bf16.mxu0 0
    %181 = vmatpush1.bf16.msra.mxu0 0
    %182 = vmatprep.subr.bf16.mxu0 0
    %183 = vmatpush1.bf16.msra.mxu0 0
    %184 = vmatprep.subr.bf16.mxu0 0
    %185 = vmatpush1.bf16.msra.mxu0 0
    %186 = vmatprep.subr.bf16.mxu0 0
    %187 = vmatpush1.bf16.msra.mxu0 0
    %188 = vmatprep.subr.bf16.mxu0 0
    %189 = vmatpush1.bf16.msra.mxu0 0
    %190 = vmatprep.subr.bf16.mxu0 0
    %191 = vmatpush1.bf16.msra.mxu0 0
    %192 = vmatprep.subr.bf16.mxu0 0
    %193 = vmatpush1.bf16.msra.mxu0 0
    %194 = vmatprep.subr.bf16.mxu0 0
    %195 = vmatpush1.bf16.msra.mxu0 0
    %196 = vmatprep.subr.bf16.mxu0 0
    %197 = vmatpush1.bf16.msra.mxu0 0
    %198 = vmatprep.subr.bf16.mxu0 0
    %199 = vmatpush1.bf16.msra.mxu0 0
    %200 = vmatprep.mubr.bf16.mxu0 0
    %201 = vmatmul.mubr.bf16.gmra.mrb[0].mxu0 %v157
    %v202 = vpop.f32.mrb[0].mxu0
    %v203 = vadd.f32 %v98, %v202
    %v204 = vpop.f32.mrb[0].mxu0
    %v205 = vadd.f32 %v102, %v204
    %v206 = vpop.f32.mrb[0].mxu0
    %v207 = vadd.f32 %v98, %v206
    %v208 = vpop.f32.mrb[0].mxu0
    %v209 = vadd.f32 %v102, %v208
    %210 = vmatprep.mubr.bf16.mxu0 0
    %211 = vmatmul.mubr.bf16.gmra.mrb[0].mxu0 %v160
    %v212 = vpop.f32.mrb[0].mxu0
    %v213 = vadd.f32 %v98, %v212
    %v214 = vpop.f32.mrb[0].mxu0
    %v215 = vadd.f32 %v102, %v214
    %v216 = vpop.f32.mrb[0].mxu0
    %v217 = vadd.f32 %v98, %v216
    %v218 = vpop.f32.mrb[0].mxu0
    %v219 = vadd.f32 %v102, %v218
    %220 = vmatprep.mubr.bf16.mxu0 0
    %221 = vmatmul.mubr.bf16.gmra.mrb[0].mxu0 %v163
    %v222 = vpop.f32.mrb[0].mxu0
    %v223 = vadd.f32 %v98, %v222
    %v224 = vpop.f32.mrb[0].mxu0
    %v225 = vadd.f32 %v102, %v224
    %v226 = vpop.f32.mrb[0].mxu0
    %v227 = vadd.f32 %v98, %v226
    %v228 = vpop.f32.mrb[0].mxu0
    %v229 = vadd.f32 %v102, %v228
    %230 = vmatprep.mubr.bf16.mxu0 0
    %231 = vmatmul.mubr.bf16.gmra.mrb[0].mxu0 %v166
    %v232 = vpop.f32.mrb[0].mxu0
    %v233 = vadd.f32 %v98, %v232
    %v234 = vpop.f32.mrb[0].mxu0
    %v235 = vadd.f32 %v102, %v234
    %v236 = vpop.f32.mrb[0].mxu0
    %v237 = vadd.f32 %v98, %v236
    %v238 = vpop.f32.mrb[0].mxu0
    %v239 = vadd.f32 %v102, %v238
    %240 = vdwg.mxu0
    %241 = vmatprep.subr.bf16.mxu0 %v150
    %242 = vmatpush1.bf16.msra.mxu0 %v149
    %243 = vmatprep.subr.bf16.mxu0 0
    %244 = vmatpush1.bf16.msra.mxu0 0
    %245 = vmatprep.subr.bf16.mxu0 0
    %246 = vmatpush1.bf16.msra.mxu0 0
    %247 = vmatprep.subr.bf16.mxu0 0
    %248 = vmatpush1.bf16.msra.mxu0 0
    %249 = vmatprep.subr.bf16.mxu0 0
    %250 = vmatpush1.bf16.msra.mxu0 0
    %251 = vmatprep.subr.bf16.mxu0 0
    %252 = vmatpush1.bf16.msra.mxu0 0
    %253 = vmatprep.subr.bf16.mxu0 0
    %254 = vmatpush1.bf16.msra.mxu0 0
    %255 = vmatprep.subr.bf16.mxu0 0
    %256 = vmatpush1.bf16.msra.mxu0 0
    %257 = vmatprep.subr.bf16.mxu0 0
    %258 = vmatpush1.bf16.msra.mxu0 0
    %259 = vmatprep.subr.bf16.mxu0 0
    %260 = vmatpush1.bf16.msra.mxu0 0
    %261 = vmatprep.subr.bf16.mxu0 0
    %262 = vmatpush1.bf16.msra.mxu0 0
    %263 = vmatprep.subr.bf16.mxu0 0
    %264 = vmatpush1.bf16.msra.mxu0 0
    %265 = vmatprep.subr.bf16.mxu0 0
    %266 = vmatpush1.bf16.msra.mxu0 0
    %267 = vmatprep.subr.bf16.mxu0 0
    %268 = vmatpush1.bf16.msra.mxu0 0
    %269 = vmatprep.subr.bf16.mxu0 0
    %270 = vmatpush1.bf16.msra.mxu0 0
    %271 = vmatprep.subr.bf16.mxu0 0
    %272 = vmatpush1.bf16.msra.mxu0 0
    %273 = vmatprep.mubr.bf16.mxu0 0
    %274 = vmatmul.mubr.bf16.gmra.mrb[0].mxu0 %v157
    %v275 = vpop.f32.mrb[0].mxu0
    %v276 = vadd.f32 %v106, %v275
    %v277 = vpop.f32.mrb[0].mxu0
    %v278 = vadd.f32 %v110, %v277
    %v279 = vpop.f32.mrb[0].mxu0
    %v280 = vadd.f32 %v106, %v279
    %v281 = vpop.f32.mrb[0].mxu0
    %v282 = vadd.f32 %v110, %v281
    %283 = vmatprep.mubr.bf16.mxu0 0
    %284 = vmatmul.mubr.bf16.gmra.mrb[0].mxu0 %v160
    %v285 = vpop.f32.mrb[0].mxu0
    %v286 = vadd.f32 %v106, %v285
    %v287 = vpop.f32.mrb[0].mxu0
    %v288 = vadd.f32 %v110, %v287
    %v289 = vpop.f32.mrb[0].mxu0
    %v290 = vadd.f32 %v106, %v289
    %v291 = vpop.f32.mrb[0].mxu0
    %v292 = vadd.f32 %v110, %v291
    %293 = vmatprep.mubr.bf16.mxu0 0
    %294 = vmatmul.mubr.bf16.gmra.mrb[0].mxu0 %v163
    %v295 = vpop.f32.mrb[0].mxu0
    %v296 = vadd.f32 %v106, %v295
    %v297 = vpop.f32.mrb[0].mxu0
    %v298 = vadd.f32 %v110, %v297
    %v299 = vpop.f32.mrb[0].mxu0
    %v300 = vadd.f32 %v106, %v299
    %v301 = vpop.f32.mrb[0].mxu0
    %v302 = vadd.f32 %v110, %v301
    %303 = vmatprep.mubr.bf16.mxu0 0
    %304 = vmatmul.mubr.bf16.gmra.mrb[0].mxu0 %v166
    %v305 = vpop.f32.mrb[0].mxu0
    %v306 = vadd.f32 %v106, %v305
    %v307 = vpop.f32.mrb[0].mxu0
    %v308 = vadd.f32 %v110, %v307
    %v309 = vpop.f32.mrb[0].mxu0
    %v310 = vadd.f32 %v106, %v309
    %v311 = vpop.f32.mrb[0].mxu0
    %v312 = vadd.f32 %v110, %v311
    %313 = vdwg.mxu0
    %314 = vst [vmem:[#allocation4] sm:$0xff] %v203
    %315 = vst [vmem:[#allocation4 + $0x8] sm:$0xff] %v205
    %316 = vst [vmem:[#allocation4 + $0x10] sm:$0xff] %v276
    %317 = vst [vmem:[#allocation4 + $0x18] sm:$0xff] %v278
    %318 = vst [vmem:[#allocation4 + $0x20] sm:$0xff] %v207
    %319 = vst [vmem:[#allocation4 + $0x28] sm:$0xff] %v209
    %320 = vst [vmem:[#allocation4 + $0x30] sm:$0xff] %v280
    %321 = vst [vmem:[#allocation4 + $0x38] sm:$0xff] %v282
    %322 = vst [vmem:[#allocation4 + $0x40] sm:$0xff] %v213
    %323 = vst [vmem:[#allocation4 + $0x48] sm:$0xff] %v215
    %324 = vst [vmem:[#allocation4 + $0x50] sm:$0xff] %v286
    %325 = vst [vmem:[#allocation4 + $0x58] sm:$0xff] %v288
    %326 = vst [vmem:[#allocation4 + $0x60] sm:$0xff] %v217
    %327 = vst [vmem:[#allocation4 + $0x68] sm:$0xff] %v219
    %328 = vst [vmem:[#allocation4 + $0x70] sm:$0xff] %v290
    %329 = vst [vmem:[#allocation4 + $0x78] sm:$0xff] %v292
    %330 = vst [vmem:[#allocation4 + $0x80] sm:$0xff] %v223
    %331 = vst [vmem:[#allocation4 + $0x88] sm:$0xff] %v225
    %332 = vst [vmem:[#allocation4 + $0x90] sm:$0xff] %v296
    %333 = vst [vmem:[#allocation4 + $0x98] sm:$0xff] %v298
    %334 = vst [vmem:[#allocation4 + $0xa0] sm:$0xff] %v227
    %335 = vst [vmem:[#allocation4 + $0xa8] sm:$0xff] %v229
    %336 = vst [vmem:[#allocation4 + $0xb0] sm:$0xff] %v300
    %337 = vst [vmem:[#allocation4 + $0xb8] sm:$0xff] %v302
    %338 = vst [vmem:[#allocation4 + $0xc0] sm:$0xff] %v233
    %339 = vst [vmem:[#allocation4 + $0xc8] sm:$0xff] %v235
    %340 = vst [vmem:[#allocation4 + $0xd0] sm:$0xff] %v306
    %341 = vst [vmem:[#allocation4 + $0xd8] sm:$0xff] %v308
    %342 = vst [vmem:[#allocation4 + $0xe0] sm:$0xff] %v237
    %343 = vst [vmem:[#allocation4 + $0xe8] sm:$0xff] %v239
    %344 = vst [vmem:[#allocation4 + $0xf0] sm:$0xff] %v310
    %345 = vst [vmem:[#allocation4 + $0xf8] sm:$0xff] %v312
    %v346 = vld [vmem:[#allocation2] sm:$0xff]
    %v347 = vld [vmem:[#allocation3] sm:$0xff]
    %v348 = vpack.c.bf16 %v346, %v346
    %s349 = smul.u32 0, 4
    %s350 = smul.addr %s349, 8
    %s351 = scalar_lea.vmem [#allocation4], %s350
    %v352 = vld [vmem:[%s351] sm:$0xff]
    %v353 = vld [vmem:[%s351 + $0x8] sm:$0xff]
    %v354 = vld [vmem:[%s351 + $0x10] sm:$0xff]
    %v355 = vld [vmem:[%s351 + $0x18] sm:$0xff]
    %v356 = vld [vmem:[#allocation5] sm:$0xff]
    %v357 = vld [vmem:[#allocation5 + $0x8] sm:$0xff]
    %v358 = vld [vmem:[#allocation5 + $0x10] sm:$0xff]
    %v359 = vld [vmem:[#allocation5 + $0x18] sm:$0xff]
    %v360 = vld [vmem:[#allocation5 + $0x20] sm:$0xff]
    %v361 = vld [vmem:[#allocation5 + $0x28] sm:$0xff]
    %v362 = vld [vmem:[#allocation5 + $0x30] sm:$0xff]
    %v363 = vld [vmem:[#allocation5 + $0x38] sm:$0xff]
    %v364 = vld [vmem:[#allocation5 + $0x40] sm:$0xff]
    %v365 = vld [vmem:[#allocation5 + $0x48] sm:$0xff]
    %v366 = vld [vmem:[#allocation5 + $0x50] sm:$0xff]
    %v367 = vld [vmem:[#allocation5 + $0x58] sm:$0xff]
    %v368 = vld [vmem:[#allocation5 + $0x60] sm:$0xff]
    %v369 = vld [vmem:[#allocation5 + $0x68] sm:$0xff]
    %v370 = vld [vmem:[#allocation5 + $0x70] sm:$0xff]
    %v371 = vld [vmem:[#allocation5 + $0x78] sm:$0xff]
    %v372 = vld [vmem:[#allocation5 + $0x80] sm:$0xff]
    %v373 = vld [vmem:[#allocation5 + $0x88] sm:$0xff]
    %v374 = vld [vmem:[#allocation5 + $0x90] sm:$0xff]
    %v375 = vld [vmem:[#allocation5 + $0x98] sm:$0xff]
    %v376 = vld [vmem:[#allocation5 + $0xa0] sm:$0xff]
    %v377 = vld [vmem:[#allocation5 + $0xa8] sm:$0xff]
    %v378 = vld [vmem:[#allocation5 + $0xb0] sm:$0xff]
    %v379 = vld [vmem:[#allocation5 + $0xb8] sm:$0xff]
    %v380 = vld [vmem:[#allocation5 + $0xc0] sm:$0xff]
    %v381 = vld [vmem:[#allocation5 + $0xc8] sm:$0xff]
    %v382 = vld [vmem:[#allocation5 + $0xd0] sm:$0xff]
    %v383 = vld [vmem:[#allocation5 + $0xd8] sm:$0xff]
    %v384 = vld [vmem:[#allocation5 + $0xe0] sm:$0xff]
    %v385 = vld [vmem:[#allocation5 + $0xe8] sm:$0xff]
    %v386 = vld [vmem:[#allocation5 + $0xf0] sm:$0xff]
    %v387 = vld [vmem:[#allocation5 + $0xf8] sm:$0xff]
    %v420 = vunpack.c.l.b16 %v356
    %v421 = vunpack.c.h.b16 %v356
    %v422 = vunpack.c.l.b16 %v357
    %v423 = vunpack.c.h.b16 %v357
    %v424 = vunpack.c.l.b16 %v358
    %v425 = vunpack.c.h.b16 %v358
    %v426 = vunpack.c.l.b16 %v359
    %v427 = vunpack.c.h.b16 %v359
    %v428 = vunpack.c.l.b16 %v360
    %v429 = vunpack.c.h.b16 %v360
    %v430 = vunpack.c.l.b16 %v361
    %v431 = vunpack.c.h.b16 %v361
    %v432 = vunpack.c.l.b16 %v362
    %v433 = vunpack.c.h.b16 %v362
    %v434 = vunpack.c.l.b16 %v363
    %v435 = vunpack.c.h.b16 %v363
    %v436 = vunpack.c.l.b16 %v364
    %v437 = vunpack.c.h.b16 %v364
    %v438 = vunpack.c.l.b16 %v365
    %v439 = vunpack.c.h.b16 %v365
    %v440 = vunpack.c.l.b16 %v366
    %v441 = vunpack.c.h.b16 %v366
    %v442 = vunpack.c.l.b16 %v367
    %v443 = vunpack.c.h.b16 %v367
    %v444 = vunpack.c.l.b16 %v368
    %v445 = vunpack.c.h.b16 %v368
    %v446 = vunpack.c.l.b16 %v369
    %v447 = vunpack.c.h.b16 %v369
    %v448 = vunpack.c.l.b16 %v370
    %v449 = vunpack.c.h.b16 %v370
    %v450 = vunpack.c.l.b16 %v371
    %v451 = vunpack.c.h.b16 %v371
    %v452 = vunpack.c.l.b16 %v372
    %v453 = vunpack.c.h.b16 %v372
    %v454 = vunpack.c.l.b16 %v373
    %v455 = vunpack.c.h.b16 %v373
    %v456 = vunpack.c.l.b16 %v374
    %v457 = vunpack.c.h.b16 %v374
    %v458 = vunpack.c.l.b16 %v375
    %v459 = vunpack.c.h.b16 %v375
    %v460 = vunpack.c.l.b16 %v376
    %v461 = vunpack.c.h.b16 %v376
    %v462 = vunpack.c.l.b16 %v377
    %v463 = vunpack.c.h.b16 %v377
    %v464 = vunpack.c.l.b16 %v378
    %v465 = vunpack.c.h.b16 %v378
    %v466 = vunpack.c.l.b16 %v379
    %v467 = vunpack.c.h.b16 %v379
    %v468 = vunpack.c.l.b16 %v380
    %v469 = vunpack.c.h.b16 %v380
    %v470 = vunpack.c.l.b16 %v381
    %v471 = vunpack.c.h.b16 %v381
    %v472 = vunpack.c.l.b16 %v382
    %v473 = vunpack.c.h.b16 %v382
    %v474 = vunpack.c.l.b16 %v383
    %v475 = vunpack.c.h.b16 %v383
    %v476 = vunpack.c.l.b16 %v384
    %v477 = vunpack.c.h.b16 %v384
    %v478 = vunpack.c.l.b16 %v385
    %v479 = vunpack.c.h.b16 %v385
    %v480 = vunpack.c.l.b16 %v386
    %v481 = vunpack.c.h.b16 %v386
    %v482 = vunpack.c.l.b16 %v387
    %v483 = vunpack.c.h.b16 %v387
    %v484 = vpack.c.b16 %v424, %v420
    %v485 = vpack.c.b16 %v425, %v421
    %v486 = vpack.c.b16 %v426, %v422
    %v487 = vpack.c.b16 %v427, %v423
    %v488 = vpack.c.b16 %v432, %v428
    %v489 = vpack.c.b16 %v433, %v429
    %v490 = vpack.c.b16 %v434, %v430
    %v491 = vpack.c.b16 %v435, %v431
    %v492 = vpack.c.b16 %v440, %v436
    %v493 = vpack.c.b16 %v441, %v437
    %v494 = vpack.c.b16 %v442, %v438
    %v495 = vpack.c.b16 %v443, %v439
    %v496 = vpack.c.b16 %v448, %v444
    %v497 = vpack.c.b16 %v449, %v445
    %v498 = vpack.c.b16 %v450, %v446
    %v499 = vpack.c.b16 %v451, %v447
    %v500 = vpack.c.b16 %v456, %v452
    %v501 = vpack.c.b16 %v457, %v453
    %v502 = vpack.c.b16 %v458, %v454
    %v503 = vpack.c.b16 %v459, %v455
    %v504 = vpack.c.b16 %v464, %v460
    %v505 = vpack.c.b16 %v465, %v461
    %v506 = vpack.c.b16 %v466, %v462
    %v507 = vpack.c.b16 %v467, %v463
    %v508 = vpack.c.b16 %v472, %v468
    %v509 = vpack.c.b16 %v473, %v469
    %v510 = vpack.c.b16 %v474, %v470
    %v511 = vpack.c.b16 %v475, %v471
    %v512 = vpack.c.b16 %v480, %v476
    %v513 = vpack.c.b16 %v481, %v477
    %v514 = vpack.c.b16 %v482, %v478
    %v515 = vpack.c.b16 %v483, %v479
    %548 = vmatprep.subr.bf16.mxu0 %v485
    %549 = vmatpush1.bf16.msra.mxu0 %v484
    %550 = vmatprep.subr.bf16.mxu0 %v489
    %551 = vmatpush1.bf16.msra.mxu0 %v488
    %552 = vmatprep.subr.bf16.mxu0 %v493
    %553 = vmatpush1.bf16.msra.mxu0 %v492
    %554 = vmatprep.subr.bf16.mxu0 %v497
    %555 = vmatpush1.bf16.msra.mxu0 %v496
    %556 = vmatprep.subr.bf16.mxu0 %v501
    %557 = vmatpush1.bf16.msra.mxu0 %v500
    %558 = vmatprep.subr.bf16.mxu0 %v505
    %559 = vmatpush1.bf16.msra.mxu0 %v504
    %560 = vmatprep.subr.bf16.mxu0 %v509
    %561 = vmatpush1.bf16.msra.mxu0 %v508
    %562 = vmatprep.subr.bf16.mxu0 %v513
    %563 = vmatpush1.bf16.msra.mxu0 %v512
    %564 = vmatprep.subr.bf16.mxu0 0
    %565 = vmatpush1.bf16.msra.mxu0 0
    %566 = vmatprep.subr.bf16.mxu0 0
    %567 = vmatpush1.bf16.msra.mxu0 0
    %568 = vmatprep.subr.bf16.mxu0 0
    %569 = vmatpush1.bf16.msra.mxu0 0
    %570 = vmatprep.subr.bf16.mxu0 0
    %571 = vmatpush1.bf16.msra.mxu0 0
    %572 = vmatprep.subr.bf16.mxu0 0
    %573 = vmatpush1.bf16.msra.mxu0 0
    %574 = vmatprep.subr.bf16.mxu0 0
    %575 = vmatpush1.bf16.msra.mxu0 0
    %576 = vmatprep.subr.bf16.mxu0 0
    %577 = vmatpush1.bf16.msra.mxu0 0
    %578 = vmatprep.subr.bf16.mxu0 0
    %579 = vmatpush1.bf16.msra.mxu0 0
    %580 = vmatprep.mubr.bf16.mxu0 0
    %581 = vmatmul.mubr.bf16.gmra.mrb[0].mxu0 %v348
    %v582 = vpop.f32.mrb[0].mxu0
    %v583 = vadd.f32 0.0, %v582
    %v584 = vpop.f32.mrb[0].mxu0
    %v585 = vadd.f32 0.0, %v584
    %v586 = vpop.f32.mrb[0].mxu0
    %v587 = vpop.f32.mrb[0].mxu0
    %588 = vdwg.mxu0
    %589 = vmatprep.subr.bf16.mxu0 %v487
    %590 = vmatpush1.bf16.msra.mxu0 %v486
    %591 = vmatprep.subr.bf16.mxu0 %v491
    %592 = vmatpush1.bf16.msra.mxu0 %v490
    %593 = vmatprep.subr.bf16.mxu0 %v495
    %594 = vmatpush1.bf16.msra.mxu0 %v494
    %595 = vmatprep.subr.bf16.mxu0 %v499
    %596 = vmatpush1.bf16.msra.mxu0 %v498
    %597 = vmatprep.subr.bf16.mxu0 %v503
    %598 = vmatpush1.bf16.msra.mxu0 %v502
    %599 = vmatprep.subr.bf16.mxu0 %v507
    %600 = vmatpush1.bf16.msra.mxu0 %v506
    %601 = vmatprep.subr.bf16.mxu0 %v511
    %602 = vmatpush1.bf16.msra.mxu0 %v510
    %603 = vmatprep.subr.bf16.mxu0 %v515
    %604 = vmatpush1.bf16.msra.mxu0 %v514
    %605 = vmatprep.subr.bf16.mxu0 0
    %606 = vmatpush1.bf16.msra.mxu0 0
    %607 = vmatprep.subr.bf16.mxu0 0
    %608 = vmatpush1.bf16.msra.mxu0 0
    %609 = vmatprep.subr.bf16.mxu0 0
    %610 = vmatpush1.bf16.msra.mxu0 0
    %611 = vmatprep.subr.bf16.mxu0 0
    %612 = vmatpush1.bf16.msra.mxu0 0
    %613 = vmatprep.subr.bf16.mxu0 0
    %614 = vmatpush1.bf16.msra.mxu0 0
    %615 = vmatprep.subr.bf16.mxu0 0
    %616 = vmatpush1.bf16.msra.mxu0 0
    %617 = vmatprep.subr.bf16.mxu0 0
    %618 = vmatpush1.bf16.msra.mxu0 0
    %619 = vmatprep.subr.bf16.mxu0 0
    %620 = vmatpush1.bf16.msra.mxu0 0
    %621 = vmatprep.mubr.bf16.mxu0 0
    %622 = vmatmul.mubr.bf16.gmra.mrb[0].mxu0 %v348
    %v623 = vpop.f32.mrb[0].mxu0
    %v624 = vadd.f32 0.0, %v623
    %v625 = vpop.f32.mrb[0].mxu0
    %v626 = vadd.f32 0.0, %v625
    %v627 = vpop.f32.mrb[0].mxu0
    %v628 = vpop.f32.mrb[0].mxu0
    %629 = vdwg.mxu0
    %v630 = vadd.f32 %v352, %v583
    %v631 = vadd.f32 %v353, %v585
    %v632 = vadd.f32 %v354, %v624
    %v633 = vadd.f32 %v355, %v626
    %v634 = vxor.u32 %v630, 2147483648
    %v635 = vmul.f32 %v634, 1.442695
    %v636 = vpow.pop %v635
    %v637 = vadd.f32 %v636, 1.0
    %v638 = vrcp.pop %v637
    %v639 = vmul.f32 1.0, %v638
    %v640 = vxor.u32 %v631, 2147483648
    %v641 = vmul.f32 %v640, 1.442695
    %v642 = vpow.pop %v641
    %v643 = vadd.f32 %v642, 1.0
    %v644 = vrcp.pop %v643
    %v645 = vmul.f32 1.0, %v644
    %v646 = vtanh.pop %v632
    %v647 = vxor.u32 %v633, 2147483648
    %v648 = vmul.f32 %v647, 1.442695
    %v649 = vpow.pop %v648
    %v650 = vadd.f32 %v649, 1.0
    %v651 = vrcp.pop %v650
    %v652 = vmul.f32 1.0, %v651
    %v653 = vmul.f32 %v645, %v347
    %v654 = vmul.f32 %v639, %v646
    %v655 = vadd.f32 %v653, %v654
    %v656 = vtanh.pop %v655
    %v657 = vmul.f32 %v652, %v656
    %v658 = vpack.c.bf16 %v657, %v657
    %s659 = smul.u32 1, 4
    %s660 = smul.addr %s659, 8
    %s661 = scalar_lea.vmem [#allocation4], %s660
    %v662 = vld [vmem:[%s661] sm:$0xff]
    %v663 = vld [vmem:[%s661 + $0x8] sm:$0xff]
    %v664 = vld [vmem:[%s661 + $0x10] sm:$0xff]
    %v665 = vld [vmem:[%s661 + $0x18] sm:$0xff]
    %666 = vmatprep.subr.bf16.mxu0 %v485
    %667 = vmatpush1.bf16.msra.mxu0 %v484
    %668 = vmatprep.subr.bf16.mxu0 %v489
    %669 = vmatpush1.bf16.msra.mxu0 %v488
    %670 = vmatprep.subr.bf16.mxu0 %v493
    %671 = vmatpush1.bf16.msra.mxu0 %v492
    %672 = vmatprep.subr.bf16.mxu0 %v497
    %673 = vmatpush1.bf16.msra.mxu0 %v496
    %674 = vmatprep.subr.bf16.mxu0 %v501
    %675 = vmatpush1.bf16.msra.mxu0 %v500
    %676 = vmatprep.subr.bf16.mxu0 %v505
    %677 = vmatpush1.bf16.msra.mxu0 %v504
    %678 = vmatprep.subr.bf16.mxu0 %v509
    %679 = vmatpush1.bf16.msra.mxu0 %v508
    %680 = vmatprep.subr.bf16.mxu0 %v513
    %681 = vmatpush1.bf16.msra.mxu0 %v512
    %682 = vmatprep.subr.bf16.mxu0 0
    %683 = vmatpush1.bf16.msra.mxu0 0
    %684 = vmatprep.subr.bf16.mxu0 0
    %685 = vmatpush1.bf16.msra.mxu0 0
    %686 = vmatprep.subr.bf16.mxu0 0
    %687 = vmatpush1.bf16.msra.mxu0 0
    %688 = vmatprep.subr.bf16.mxu0 0
    %689 = vmatpush1.bf16.msra.mxu0 0
    %690 = vmatprep.subr.bf16.mxu0 0
    %691 = vmatpush1.bf16.msra.mxu0 0
    %692 = vmatprep.subr.bf16.mxu0 0
    %693 = vmatpush1.bf16.msra.mxu0 0
    %694 = vmatprep.subr.bf16.mxu0 0
    %695 = vmatpush1.bf16.msra.mxu0 0
    %696 = vmatprep.subr.bf16.mxu0 0
    %697 = vmatpush1.bf16.msra.mxu0 0
    %698 = vmatprep.mubr.bf16.mxu0 0
    %699 = vmatmul.mubr.bf16.gmra.mrb[0].mxu0 %v658
    %v700 = vpop.f32.mrb[0].mxu0
    %v701 = vadd.f32 0.0, %v700
    %v702 = vpop.f32.mrb[0].mxu0
    %v703 = vadd.f32 0.0, %v702
    %v704 = vpop.f32.mrb[0].mxu0
    %v705 = vpop.f32.mrb[0].mxu0
    %706 = vdwg.mxu0
    %707 = vmatprep.subr.bf16.mxu0 %v487
    %708 = vmatpush1.bf16.msra.mxu0 %v486
    %709 = vmatprep.subr.bf16.mxu0 %v491
    %710 = vmatpush1.bf16.msra.mxu0 %v490
    %711 = vmatprep.subr.bf16.mxu0 %v495
    %712 = vmatpush1.bf16.msra.mxu0 %v494
    %713 = vmatprep.subr.bf16.mxu0 %v499
    %714 = vmatpush1.bf16.msra.mxu0 %v498
    %715 = vmatprep.subr.bf16.mxu0 %v503
    %716 = vmatpush1.bf16.msra.mxu0 %v502
    %717 = vmatprep.subr.bf16.mxu0 %v507
    %718 = vmatpush1.bf16.msra.mxu0 %v506
    %719 = vmatprep.subr.bf16.mxu0 %v511
    %720 = vmatpush1.bf16.msra.mxu0 %v510
    %721 = vmatprep.subr.bf16.mxu0 %v515
    %722 = vmatpush1.bf16.msra.mxu0 %v514
    %723 = vmatprep.subr.bf16.mxu0 0
    %724 = vmatpush1.bf16.msra.mxu0 0
    %725 = vmatprep.subr.bf16.mxu0 0
    %726 = vmatpush1.bf16.msra.mxu0 0
    %727 = vmatprep.subr.bf16.mxu0 0
    %728 = vmatpush1.bf16.msra.mxu0 0
    %729 = vmatprep.subr.bf16.mxu0 0
    %730 = vmatpush1.bf16.msra.mxu0 0
    %731 = vmatprep.subr.bf16.mxu0 0
    %732 = vmatpush1.bf16.msra.mxu0 0
    %733 = vmatprep.subr.bf16.mxu0 0
    %734 = vmatpush1.bf16.msra.mxu0 0
    %735 = vmatprep.subr.bf16.mxu0 0
    %736 = vmatpush1.bf16.msra.mxu0 0
    %737 = vmatprep.subr.bf16.mxu0 0
    %738 = vmatpush1.bf16.msra.mxu0 0
    %739 = vmatprep.mubr.bf16.mxu0 0
    %740 = vmatmul.mubr.bf16.gmra.mrb[0].mxu0 %v658
    %v741 = vpop.f32.mrb[0].mxu0
    %v742 = vadd.f32 0.0, %v741
    %v743 = vpop.f32.mrb[0].mxu0
    %v744 = vadd.f32 0.0, %v743
    %v745 = vpop.f32.mrb[0].mxu0
    %v746 = vpop.f32.mrb[0].mxu0
    %747 = vdwg.mxu0
    %v748 = vadd.f32 %v662, %v701
    %v749 = vadd.f32 %v663, %v703
    %v750 = vadd.f32 %v664, %v742
    %v751 = vadd.f32 %v665, %v744
    %v752 = vxor.u32 %v748, 2147483648
    %v753 = vmul.f32 %v752, 1.442695
    %v754 = vpow.pop %v753
    %v755 = vadd.f32 %v754, 1.0
    %v756 = vrcp.pop %v755
    %v757 = vmul.f32 1.0, %v756
    %v758 = vxor.u32 %v749, 2147483648
    %v759 = vmul.f32 %v758, 1.442695
    %v760 = vpow.pop %v759
    %v761 = vadd.f32 %v760, 1.0
    %v762 = vrcp.pop %v761
    %v763 = vmul.f32 1.0, %v762
    %v764 = vtanh.pop %v750
    %v765 = vxor.u32 %v751, 2147483648
    %v766 = vmul.f32 %v765, 1.442695
    %v767 = vpow.pop %v766
    %v768 = vadd.f32 %v767, 1.0
    %v769 = vrcp.pop %v768
    %v770 = vmul.f32 1.0, %v769
    %v771 = vmul.f32 %v763, %v655
    %v772 = vmul.f32 %v757, %v764
    %v773 = vadd.f32 %v771, %v772
    %v774 = vtanh.pop %v773
    %v775 = vmul.f32 %v770, %v774
    %v776 = vpack.c.bf16 %v775, %v775
    %s777 = smul.u32 2, 4
    %s778 = smul.addr %s777, 8
    %s779 = scalar_lea.vmem [#allocation4], %s778
    %v780 = vld [vmem:[%s779] sm:$0xff]
    %v781 = vld [vmem:[%s779 + $0x8] sm:$0xff]
    %v782 = vld [vmem:[%s779 + $0x10] sm:$0xff]
    %v783 = vld [vmem:[%s779 + $0x18] sm:$0xff]
    %784 = vmatprep.subr.bf16.mxu0 %v485
    %785 = vmatpush1.bf16.msra.mxu0 %v484
    %786 = vmatprep.subr.bf16.mxu0 %v489
    %787 = vmatpush1.bf16.msra.mxu0 %v488
    %788 = vmatprep.subr.bf16.mxu0 %v493
    %789 = vmatpush1.bf16.msra.mxu0 %v492
    %790 = vmatprep.subr.bf16.mxu0 %v497
    %791 = vmatpush1.bf16.msra.mxu0 %v496
    %792 = vmatprep.subr.bf16.mxu0 %v501
    %793 = vmatpush1.bf16.msra.mxu0 %v500
    %794 = vmatprep.subr.bf16.mxu0 %v505
    %795 = vmatpush1.bf16.msra.mxu0 %v504
    %796 = vmatprep.subr.bf16.mxu0 %v509
    %797 = vmatpush1.bf16.msra.mxu0 %v508
    %798 = vmatprep.subr.bf16.mxu0 %v513
    %799 = vmatpush1.bf16.msra.mxu0 %v512
    %800 = vmatprep.subr.bf16.mxu0 0
    %801 = vmatpush1.bf16.msra.mxu0 0
    %802 = vmatprep.subr.bf16.mxu0 0
    %803 = vmatpush1.bf16.msra.mxu0 0
    %804 = vmatprep.subr.bf16.mxu0 0
    %805 = vmatpush1.bf16.msra.mxu0 0
    %806 = vmatprep.subr.bf16.mxu0 0
    %807 = vmatpush1.bf16.msra.mxu0 0
    %808 = vmatprep.subr.bf16.mxu0 0
    %809 = vmatpush1.bf16.msra.mxu0 0
    %810 = vmatprep.subr.bf16.mxu0 0
    %811 = vmatpush1.bf16.msra.mxu0 0
    %812 = vmatprep.subr.bf16.mxu0 0
    %813 = vmatpush1.bf16.msra.mxu0 0
    %814 = vmatprep.subr.bf16.mxu0 0
    %815 = vmatpush1.bf16.msra.mxu0 0
    %816 = vmatprep.mubr.bf16.mxu0 0
    %817 = vmatmul.mubr.bf16.gmra.mrb[0].mxu0 %v776
    %v818 = vpop.f32.mrb[0].mxu0
    %v819 = vadd.f32 0.0, %v818
    %v820 = vpop.f32.mrb[0].mxu0
    %v821 = vadd.f32 0.0, %v820
    %v822 = vpop.f32.mrb[0].mxu0
    %v823 = vpop.f32.mrb[0].mxu0
    %824 = vdwg.mxu0
    %825 = vmatprep.subr.bf16.mxu0 %v487
    %826 = vmatpush1.bf16.msra.mxu0 %v486
    %827 = vmatprep.subr.bf16.mxu0 %v491
    %828 = vmatpush1.bf16.msra.mxu0 %v490
    %829 = vmatprep.subr.bf16.mxu0 %v495
    %830 = vmatpush1.bf16.msra.mxu0 %v494
    %831 = vmatprep.subr.bf16.mxu0 %v499
    %832 = vmatpush1.bf16.msra.mxu0 %v498
    %833 = vmatprep.subr.bf16.mxu0 %v503
    %834 = vmatpush1.bf16.msra.mxu0 %v502
    %835 = vmatprep.subr.bf16.mxu0 %v507
    %836 = vmatpush1.bf16.msra.mxu0 %v506
    %837 = vmatprep.subr.bf16.mxu0 %v511
    %838 = vmatpush1.bf16.msra.mxu0 %v510
    %839 = vmatprep.subr.bf16.mxu0 %v515
    %840 = vmatpush1.bf16.msra.mxu0 %v514
    %841 = vmatprep.subr.bf16.mxu0 0
    %842 = vmatpush1.bf16.msra.mxu0 0
    %843 = vmatprep.subr.bf16.mxu0 0
    %844 = vmatpush1.bf16.msra.mxu0 0
    %845 = vmatprep.subr.bf16.mxu0 0
    %846 = vmatpush1.bf16.msra.mxu0 0
    %847 = vmatprep.subr.bf16.mxu0 0
    %848 = vmatpush1.bf16.msra.mxu0 0
    %849 = vmatprep.subr.bf16.mxu0 0
    %850 = vmatpush1.bf16.msra.mxu0 0
    %851 = vmatprep.subr.bf16.mxu0 0
    %852 = vmatpush1.bf16.msra.mxu0 0
    %853 = vmatprep.subr.bf16.mxu0 0
    %854 = vmatpush1.bf16.msra.mxu0 0
    %855 = vmatprep.subr.bf16.mxu0 0
    %856 = vmatpush1.bf16.msra.mxu0 0
    %857 = vmatprep.mubr.bf16.mxu0 0
    %858 = vmatmul.mubr.bf16.gmra.mrb[0].mxu0 %v776
    %v859 = vpop.f32.mrb[0].mxu0
    %v860 = vadd.f32 0.0, %v859
    %v861 = vpop.f32.mrb[0].mxu0
    %v862 = vadd.f32 0.0, %v861
    %v863 = vpop.f32.mrb[0].mxu0
    %v864 = vpop.f32.mrb[0].mxu0
    %865 = vdwg.mxu0
    %v866 = vadd.f32 %v780, %v819
    %v867 = vadd.f32 %v781, %v821
    %v868 = vadd.f32 %v782, %v860
    %v869 = vadd.f32 %v783, %v862
    %v870 = vxor.u32 %v866, 2147483648
    %v871 = vmul.f32 %v870, 1.442695
    %v872 = vpow.pop %v871
    %v873 = vadd.f32 %v872, 1.0
    %v874 = vrcp.pop %v873
    %v875 = vmul.f32 1.0, %v874
    %v876 = vxor.u32 %v867, 2147483648
    %v877 = vmul.f32 %v876, 1.442695
    %v878 = vpow.pop %v877
    %v879 = vadd.f32 %v878, 1.0
    %v880 = vrcp.pop %v879
    %v881 = vmul.f32 1.0, %v880
    %v882 = vtanh.pop %v868
    %v883 = vxor.u32 %v869, 2147483648
    %v884 = vmul.f32 %v883, 1.442695
    %v885 = vpow.pop %v884
    %v886 = vadd.f32 %v885, 1.0
    %v887 = vrcp.pop %v886
    %v888 = vmul.f32 1.0, %v887
    %v889 = vmul.f32 %v881, %v773
    %v890 = vmul.f32 %v875, %v882
    %v891 = vadd.f32 %v889, %v890
    %v892 = vtanh.pop %v891
    %v893 = vmul.f32 %v888, %v892
    %v894 = vpack.c.bf16 %v893, %v893
    %s895 = smul.u32 3, 4
    %s896 = smul.addr %s895, 8
    %s897 = scalar_lea.vmem [#allocation4], %s896
    %v898 = vld [vmem:[%s897] sm:$0xff]
    %v899 = vld [vmem:[%s897 + $0x8] sm:$0xff]
    %v900 = vld [vmem:[%s897 + $0x10] sm:$0xff]
    %v901 = vld [vmem:[%s897 + $0x18] sm:$0xff]
    %902 = vmatprep.subr.bf16.mxu0 %v485
    %903 = vmatpush1.bf16.msra.mxu0 %v484
    %904 = vmatprep.subr.bf16.mxu0 %v489
    %905 = vmatpush1.bf16.msra.mxu0 %v488
    %906 = vmatprep.subr.bf16.mxu0 %v493
    %907 = vmatpush1.bf16.msra.mxu0 %v492
    %908 = vmatprep.subr.bf16.mxu0 %v497
    %909 = vmatpush1.bf16.msra.mxu0 %v496
    %910 = vmatprep.subr.bf16.mxu0 %v501
    %911 = vmatpush1.bf16.msra.mxu0 %v500
    %912 = vmatprep.subr.bf16.mxu0 %v505
    %913 = vmatpush1.bf16.msra.mxu0 %v504
    %914 = vmatprep.subr.bf16.mxu0 %v509
    %915 = vmatpush1.bf16.msra.mxu0 %v508
    %916 = vmatprep.subr.bf16.mxu0 %v513
    %917 = vmatpush1.bf16.msra.mxu0 %v512
    %918 = vmatprep.subr.bf16.mxu0 0
    %919 = vmatpush1.bf16.msra.mxu0 0
    %920 = vmatprep.subr.bf16.mxu0 0
    %921 = vmatpush1.bf16.msra.mxu0 0
    %922 = vmatprep.subr.bf16.mxu0 0
    %923 = vmatpush1.bf16.msra.mxu0 0
    %924 = vmatprep.subr.bf16.mxu0 0
    %925 = vmatpush1.bf16.msra.mxu0 0
    %926 = vmatprep.subr.bf16.mxu0 0
    %927 = vmatpush1.bf16.msra.mxu0 0
    %928 = vmatprep.subr.bf16.mxu0 0
    %929 = vmatpush1.bf16.msra.mxu0 0
    %930 = vmatprep.subr.bf16.mxu0 0
    %931 = vmatpush1.bf16.msra.mxu0 0
    %932 = vmatprep.subr.bf16.mxu0 0
    %933 = vmatpush1.bf16.msra.mxu0 0
    %934 = vmatprep.mubr.bf16.mxu0 0
    %935 = vmatmul.mubr.bf16.gmra.mrb[0].mxu0 %v894
    %v936 = vpop.f32.mrb[0].mxu0
    %v937 = vadd.f32 0.0, %v936
    %v938 = vpop.f32.mrb[0].mxu0
    %v939 = vadd.f32 0.0, %v938
    %v940 = vpop.f32.mrb[0].mxu0
    %v941 = vpop.f32.mrb[0].mxu0
    %942 = vdwg.mxu0
    %943 = vmatprep.subr.bf16.mxu0 %v487
    %944 = vmatpush1.bf16.msra.mxu0 %v486
    %945 = vmatprep.subr.bf16.mxu0 %v491
    %946 = vmatpush1.bf16.msra.mxu0 %v490
    %947 = vmatprep.subr.bf16.mxu0 %v495
    %948 = vmatpush1.bf16.msra.mxu0 %v494
    %949 = vmatprep.subr.bf16.mxu0 %v499
    %950 = vmatpush1.bf16.msra.mxu0 %v498
    %951 = vmatprep.subr.bf16.mxu0 %v503
    %952 = vmatpush1.bf16.msra.mxu0 %v502
    %953 = vmatprep.subr.bf16.mxu0 %v507
    %954 = vmatpush1.bf16.msra.mxu0 %v506
    %955 = vmatprep.subr.bf16.mxu0 %v511
    %956 = vmatpush1.bf16.msra.mxu0 %v510
    %957 = vmatprep.subr.bf16.mxu0 %v515
    %958 = vmatpush1.bf16.msra.mxu0 %v514
    %959 = vmatprep.subr.bf16.mxu0 0
    %960 = vmatpush1.bf16.msra.mxu0 0
    %961 = vmatprep.subr.bf16.mxu0 0
    %962 = vmatpush1.bf16.msra.mxu0 0
    %963 = vmatprep.subr.bf16.mxu0 0
    %964 = vmatpush1.bf16.msra.mxu0 0
    %965 = vmatprep.subr.bf16.mxu0 0
    %966 = vmatpush1.bf16.msra.mxu0 0
    %967 = vmatprep.subr.bf16.mxu0 0
    %968 = vmatpush1.bf16.msra.mxu0 0
    %969 = vmatprep.subr.bf16.mxu0 0
    %970 = vmatpush1.bf16.msra.mxu0 0
    %971 = vmatprep.subr.bf16.mxu0 0
    %972 = vmatpush1.bf16.msra.mxu0 0
    %973 = vmatprep.subr.bf16.mxu0 0
    %974 = vmatpush1.bf16.msra.mxu0 0
    %975 = vmatprep.mubr.bf16.mxu0 0
    %976 = vmatmul.mubr.bf16.gmra.mrb[0].mxu0 %v894
    %v977 = vpop.f32.mrb[0].mxu0
    %v978 = vadd.f32 0.0, %v977
    %v979 = vpop.f32.mrb[0].mxu0
    %v980 = vadd.f32 0.0, %v979
    %v981 = vpop.f32.mrb[0].mxu0
    %v982 = vpop.f32.mrb[0].mxu0
    %983 = vdwg.mxu0
    %v984 = vadd.f32 %v898, %v937
    %v985 = vadd.f32 %v899, %v939
    %v986 = vadd.f32 %v900, %v978
    %v987 = vadd.f32 %v901, %v980
    %v988 = vxor.u32 %v984, 2147483648
    %v989 = vmul.f32 %v988, 1.442695
    %v990 = vpow.pop %v989
    %v991 = vadd.f32 %v990, 1.0
    %v992 = vrcp.pop %v991
    %v993 = vmul.f32 1.0, %v992
    %v994 = vxor.u32 %v985, 2147483648
    %v995 = vmul.f32 %v994, 1.442695
    %v996 = vpow.pop %v995
    %v997 = vadd.f32 %v996, 1.0
    %v998 = vrcp.pop %v997
    %v999 = vmul.f32 1.0, %v998
    %v1000 = vtanh.pop %v986
    %v1001 = vxor.u32 %v987, 2147483648
    %v1002 = vmul.f32 %v1001, 1.442695
    %v1003 = vpow.pop %v1002
    %v1004 = vadd.f32 %v1003, 1.0
    %v1005 = vrcp.pop %v1004
    %v1006 = vmul.f32 1.0, %v1005
    %v1007 = vmul.f32 %v999, %v891
    %v1008 = vmul.f32 %v993, %v1000
    %v1009 = vadd.f32 %v1007, %v1008
    %v1010 = vtanh.pop %v1009
    %v1011 = vmul.f32 %v1006, %v1010
    %v1012 = vpack.c.bf16 %v1011, %v1011
    %s1013 = smul.u32 4, 4
    %s1014 = smul.addr %s1013, 8
    %s1015 = scalar_lea.vmem [#allocation4], %s1014
    %v1016 = vld [vmem:[%s1015] sm:$0xff]
    %v1017 = vld [vmem:[%s1015 + $0x8] sm:$0xff]
    %v1018 = vld [vmem:[%s1015 + $0x10] sm:$0xff]
    %v1019 = vld [vmem:[%s1015 + $0x18] sm:$0xff]
    %1020 = vmatprep.subr.bf16.mxu0 %v485
    %1021 = vmatpush1.bf16.msra.mxu0 %v484
    %1022 = vmatprep.subr.bf16.mxu0 %v489
    %1023 = vmatpush1.bf16.msra.mxu0 %v488
    %1024 = vmatprep.subr.bf16.mxu0 %v493
    %1025 = vmatpush1.bf16.msra.mxu0 %v492
    %1026 = vmatprep.subr.bf16.mxu0 %v497
    %1027 = vmatpush1.bf16.msra.mxu0 %v496
    %1028 = vmatprep.subr.bf16.mxu0 %v501
    %1029 = vmatpush1.bf16.msra.mxu0 %v500
    %1030 = vmatprep.subr.bf16.mxu0 %v505
    %1031 = vmatpush1.bf16.msra.mxu0 %v504
    %1032 = vmatprep.subr.bf16.mxu0 %v509
    %1033 = vmatpush1.bf16.msra.mxu0 %v508
    %1034 = vmatprep.subr.bf16.mxu0 %v513
    %1035 = vmatpush1.bf16.msra.mxu0 %v512
    %1036 = vmatprep.subr.bf16.mxu0 0
    %1037 = vmatpush1.bf16.msra.mxu0 0
    %1038 = vmatprep.subr.bf16.mxu0 0
    %1039 = vmatpush1.bf16.msra.mxu0 0
    %1040 = vmatprep.subr.bf16.mxu0 0
    %1041 = vmatpush1.bf16.msra.mxu0 0
    %1042 = vmatprep.subr.bf16.mxu0 0
    %1043 = vmatpush1.bf16.msra.mxu0 0
    %1044 = vmatprep.subr.bf16.mxu0 0
    %1045 = vmatpush1.bf16.msra.mxu0 0
    %1046 = vmatprep.subr.bf16.mxu0 0
    %1047 = vmatpush1.bf16.msra.mxu0 0
    %1048 = vmatprep.subr.bf16.mxu0 0
    %1049 = vmatpush1.bf16.msra.mxu0 0
    %1050 = vmatprep.subr.bf16.mxu0 0
    %1051 = vmatpush1.bf16.msra.mxu0 0
    %1052 = vmatprep.mubr.bf16.mxu0 0
    %1053 = vmatmul.mubr.bf16.gmra.mrb[0].mxu0 %v1012
    %v1054 = vpop.f32.mrb[0].mxu0
    %v1055 = vadd.f32 0.0, %v1054
    %v1056 = vpop.f32.mrb[0].mxu0
    %v1057 = vadd.f32 0.0, %v1056
    %v1058 = vpop.f32.mrb[0].mxu0
    %v1059 = vpop.f32.mrb[0].mxu0
    %1060 = vdwg.mxu0
    %1061 = vmatprep.subr.bf16.mxu0 %v487
    %1062 = vmatpush1.bf16.msra.mxu0 %v486
    %1063 = vmatprep.subr.bf16.mxu0 %v491
    %1064 = vmatpush1.bf16.msra.mxu0 %v490
    %1065 = vmatprep.subr.bf16.mxu0 %v495
    %1066 = vmatpush1.bf16.msra.mxu0 %v494
    %1067 = vmatprep.subr.bf16.mxu0 %v499
    %1068 = vmatpush1.bf16.msra.mxu0 %v498
    %1069 = vmatprep.subr.bf16.mxu0 %v503
    %1070 = vmatpush1.bf16.msra.mxu0 %v502
    %1071 = vmatprep.subr.bf16.mxu0 %v507
    %1072 = vmatpush1.bf16.msra.mxu0 %v506
    %1073 = vmatprep.subr.bf16.mxu0 %v511
    %1074 = vmatpush1.bf16.msra.mxu0 %v510
    %1075 = vmatprep.subr.bf16.mxu0 %v515
    %1076 = vmatpush1.bf16.msra.mxu0 %v514
    %1077 = vmatprep.subr.bf16.mxu0 0
    %1078 = vmatpush1.bf16.msra.mxu0 0
    %1079 = vmatprep.subr.bf16.mxu0 0
    %1080 = vmatpush1.bf16.msra.mxu0 0
    %1081 = vmatprep.subr.bf16.mxu0 0
    %1082 = vmatpush1.bf16.msra.mxu0 0
    %1083 = vmatprep.subr.bf16.mxu0 0
    %1084 = vmatpush1.bf16.msra.mxu0 0
    %1085 = vmatprep.subr.bf16.mxu0 0
    %1086 = vmatpush1.bf16.msra.mxu0 0
    %1087 = vmatprep.subr.bf16.mxu0 0
    %1088 = vmatpush1.bf16.msra.mxu0 0
    %1089 = vmatprep.subr.bf16.mxu0 0
    %1090 = vmatpush1.bf16.msra.mxu0 0
    %1091 = vmatprep.subr.bf16.mxu0 0
    %1092 = vmatpush1.bf16.msra.mxu0 0
    %1093 = vmatprep.mubr.bf16.mxu0 0
    %1094 = vmatmul.mubr.bf16.gmra.mrb[0].mxu0 %v1012
    %v1095 = vpop.f32.mrb[0].mxu0
    %v1096 = vadd.f32 0.0, %v1095
    %v1097 = vpop.f32.mrb[0].mxu0
    %v1098 = vadd.f32 0.0, %v1097
    %v1099 = vpop.f32.mrb[0].mxu0
    %v1100 = vpop.f32.mrb[0].mxu0
    %1101 = vdwg.mxu0
    %v1102 = vadd.f32 %v1016, %v1055
    %v1103 = vadd.f32 %v1017, %v1057
    %v1104 = vadd.f32 %v1018, %v1096
    %v1105 = vadd.f32 %v1019, %v1098
    %v1106 = vxor.u32 %v1102, 2147483648
    %v1107 = vmul.f32 %v1106, 1.442695
    %v1108 = vpow.pop %v1107
    %v1109 = vadd.f32 %v1108, 1.0
    %v1110 = vrcp.pop %v1109
    %v1111 = vmul.f32 1.0, %v1110
    %v1112 = vxor.u32 %v1103, 2147483648
    %v1113 = vmul.f32 %v1112, 1.442695
    %v1114 = vpow.pop %v1113
    %v1115 = vadd.f32 %v1114, 1.0
    %v1116 = vrcp.pop %v1115
    %v1117 = vmul.f32 1.0, %v1116
    %v1118 = vtanh.pop %v1104
    %v1119 = vxor.u32 %v1105, 2147483648
    %v1120 = vmul.f32 %v1119, 1.442695
    %v1121 = vpow.pop %v1120
    %v1122 = vadd.f32 %v1121, 1.0
    %v1123 = vrcp.pop %v1122
    %v1124 = vmul.f32 1.0, %v1123
    %v1125 = vmul.f32 %v1117, %v1009
    %v1126 = vmul.f32 %v1111, %v1118
    %v1127 = vadd.f32 %v1125, %v1126
    %v1128 = vtanh.pop %v1127
    %v1129 = vmul.f32 %v1124, %v1128
    %v1130 = vpack.c.bf16 %v1129, %v1129
    %s1131 = smul.u32 5, 4
    %s1132 = smul.addr %s1131, 8
    %s1133 = scalar_lea.vmem [#allocation4], %s1132
    %v1134 = vld [vmem:[%s1133] sm:$0xff]
    %v1135 = vld [vmem:[%s1133 + $0x8] sm:$0xff]
    %v1136 = vld [vmem:[%s1133 + $0x10] sm:$0xff]
    %v1137 = vld [vmem:[%s1133 + $0x18] sm:$0xff]
    %1138 = vmatprep.subr.bf16.mxu0 %v485
    %1139 = vmatpush1.bf16.msra.mxu0 %v484
    %1140 = vmatprep.subr.bf16.mxu0 %v489
    %1141 = vmatpush1.bf16.msra.mxu0 %v488
    %1142 = vmatprep.subr.bf16.mxu0 %v493
    %1143 = vmatpush1.bf16.msra.mxu0 %v492
    %1144 = vmatprep.subr.bf16.mxu0 %v497
    %1145 = vmatpush1.bf16.msra.mxu0 %v496
    %1146 = vmatprep.subr.bf16.mxu0 %v501
    %1147 = vmatpush1.bf16.msra.mxu0 %v500
    %1148 = vmatprep.subr.bf16.mxu0 %v505
    %1149 = vmatpush1.bf16.msra.mxu0 %v504
    %1150 = vmatprep.subr.bf16.mxu0 %v509
    %1151 = vmatpush1.bf16.msra.mxu0 %v508
    %1152 = vmatprep.subr.bf16.mxu0 %v513
    %1153 = vmatpush1.bf16.msra.mxu0 %v512
    %1154 = vmatprep.subr.bf16.mxu0 0
    %1155 = vmatpush1.bf16.msra.mxu0 0
    %1156 = vmatprep.subr.bf16.mxu0 0
    %1157 = vmatpush1.bf16.msra.mxu0 0
    %1158 = vmatprep.subr.bf16.mxu0 0
    %1159 = vmatpush1.bf16.msra.mxu0 0
    %1160 = vmatprep.subr.bf16.mxu0 0
    %1161 = vmatpush1.bf16.msra.mxu0 0
    %1162 = vmatprep.subr.bf16.mxu0 0
    %1163 = vmatpush1.bf16.msra.mxu0 0
    %1164 = vmatprep.subr.bf16.mxu0 0
    %1165 = vmatpush1.bf16.msra.mxu0 0
    %1166 = vmatprep.subr.bf16.mxu0 0
    %1167 = vmatpush1.bf16.msra.mxu0 0
    %1168 = vmatprep.subr.bf16.mxu0 0
    %1169 = vmatpush1.bf16.msra.mxu0 0
    %1170 = vmatprep.mubr.bf16.mxu0 0
    %1171 = vmatmul.mubr.bf16.gmra.mrb[0].mxu0 %v1130
    %v1172 = vpop.f32.mrb[0].mxu0
    %v1173 = vadd.f32 0.0, %v1172
    %v1174 = vpop.f32.mrb[0].mxu0
    %v1175 = vadd.f32 0.0, %v1174
    %v1176 = vpop.f32.mrb[0].mxu0
    %v1177 = vpop.f32.mrb[0].mxu0
    %1178 = vdwg.mxu0
    %1179 = vmatprep.subr.bf16.mxu0 %v487
    %1180 = vmatpush1.bf16.msra.mxu0 %v486
    %1181 = vmatprep.subr.bf16.mxu0 %v491
    %1182 = vmatpush1.bf16.msra.mxu0 %v490
    %1183 = vmatprep.subr.bf16.mxu0 %v495
    %1184 = vmatpush1.bf16.msra.mxu0 %v494
    %1185 = vmatprep.subr.bf16.mxu0 %v499
    %1186 = vmatpush1.bf16.msra.mxu0 %v498
    %1187 = vmatprep.subr.bf16.mxu0 %v503
    %1188 = vmatpush1.bf16.msra.mxu0 %v502
    %1189 = vmatprep.subr.bf16.mxu0 %v507
    %1190 = vmatpush1.bf16.msra.mxu0 %v506
    %1191 = vmatprep.subr.bf16.mxu0 %v511
    %1192 = vmatpush1.bf16.msra.mxu0 %v510
    %1193 = vmatprep.subr.bf16.mxu0 %v515
    %1194 = vmatpush1.bf16.msra.mxu0 %v514
    %1195 = vmatprep.subr.bf16.mxu0 0
    %1196 = vmatpush1.bf16.msra.mxu0 0
    %1197 = vmatprep.subr.bf16.mxu0 0
    %1198 = vmatpush1.bf16.msra.mxu0 0
    %1199 = vmatprep.subr.bf16.mxu0 0
    %1200 = vmatpush1.bf16.msra.mxu0 0
    %1201 = vmatprep.subr.bf16.mxu0 0
    %1202 = vmatpush1.bf16.msra.mxu0 0
    %1203 = vmatprep.subr.bf16.mxu0 0
    %1204 = vmatpush1.bf16.msra.mxu0 0
    %1205 = vmatprep.subr.bf16.mxu0 0
    %1206 = vmatpush1.bf16.msra.mxu0 0
    %1207 = vmatprep.subr.bf16.mxu0 0
    %1208 = vmatpush1.bf16.msra.mxu0 0
    %1209 = vmatprep.subr.bf16.mxu0 0
    %1210 = vmatpush1.bf16.msra.mxu0 0
    %1211 = vmatprep.mubr.bf16.mxu0 0
    %1212 = vmatmul.mubr.bf16.gmra.mrb[0].mxu0 %v1130
    %v1213 = vpop.f32.mrb[0].mxu0
    %v1214 = vadd.f32 0.0, %v1213
    %v1215 = vpop.f32.mrb[0].mxu0
    %v1216 = vadd.f32 0.0, %v1215
    %v1217 = vpop.f32.mrb[0].mxu0
    %v1218 = vpop.f32.mrb[0].mxu0
    %1219 = vdwg.mxu0
    %v1220 = vadd.f32 %v1134, %v1173
    %v1221 = vadd.f32 %v1135, %v1175
    %v1222 = vadd.f32 %v1136, %v1214
    %v1223 = vadd.f32 %v1137, %v1216
    %v1224 = vxor.u32 %v1220, 2147483648
    %v1225 = vmul.f32 %v1224, 1.442695
    %v1226 = vpow.pop %v1225
    %v1227 = vadd.f32 %v1226, 1.0
    %v1228 = vrcp.pop %v1227
    %v1229 = vmul.f32 1.0, %v1228
    %v1230 = vxor.u32 %v1221, 2147483648
    %v1231 = vmul.f32 %v1230, 1.442695
    %v1232 = vpow.pop %v1231
    %v1233 = vadd.f32 %v1232, 1.0
    %v1234 = vrcp.pop %v1233
    %v1235 = vmul.f32 1.0, %v1234
    %v1236 = vtanh.pop %v1222
    %v1237 = vxor.u32 %v1223, 2147483648
    %v1238 = vmul.f32 %v1237, 1.442695
    %v1239 = vpow.pop %v1238
    %v1240 = vadd.f32 %v1239, 1.0
    %v1241 = vrcp.pop %v1240
    %v1242 = vmul.f32 1.0, %v1241
    %v1243 = vmul.f32 %v1235, %v1127
    %v1244 = vmul.f32 %v1229, %v1236
    %v1245 = vadd.f32 %v1243, %v1244
    %v1246 = vtanh.pop %v1245
    %v1247 = vmul.f32 %v1242, %v1246
    %v1248 = vpack.c.bf16 %v1247, %v1247
    %s1249 = smul.u32 6, 4
    %s1250 = smul.addr %s1249, 8
    %s1251 = scalar_lea.vmem [#allocation4], %s1250
    %v1252 = vld [vmem:[%s1251] sm:$0xff]
    %v1253 = vld [vmem:[%s1251 + $0x8] sm:$0xff]
    %v1254 = vld [vmem:[%s1251 + $0x10] sm:$0xff]
    %v1255 = vld [vmem:[%s1251 + $0x18] sm:$0xff]
    %1256 = vmatprep.subr.bf16.mxu0 %v485
    %1257 = vmatpush1.bf16.msra.mxu0 %v484
    %1258 = vmatprep.subr.bf16.mxu0 %v489
    %1259 = vmatpush1.bf16.msra.mxu0 %v488
    %1260 = vmatprep.subr.bf16.mxu0 %v493
    %1261 = vmatpush1.bf16.msra.mxu0 %v492
    %1262 = vmatprep.subr.bf16.mxu0 %v497
    %1263 = vmatpush1.bf16.msra.mxu0 %v496
    %1264 = vmatprep.subr.bf16.mxu0 %v501
    %1265 = vmatpush1.bf16.msra.mxu0 %v500
    %1266 = vmatprep.subr.bf16.mxu0 %v505
    %1267 = vmatpush1.bf16.msra.mxu0 %v504
    %1268 = vmatprep.subr.bf16.mxu0 %v509
    %1269 = vmatpush1.bf16.msra.mxu0 %v508
    %1270 = vmatprep.subr.bf16.mxu0 %v513
    %1271 = vmatpush1.bf16.msra.mxu0 %v512
    %1272 = vmatprep.subr.bf16.mxu0 0
    %1273 = vmatpush1.bf16.msra.mxu0 0
    %1274 = vmatprep.subr.bf16.mxu0 0
    %1275 = vmatpush1.bf16.msra.mxu0 0
    %1276 = vmatprep.subr.bf16.mxu0 0
    %1277 = vmatpush1.bf16.msra.mxu0 0
    %1278 = vmatprep.subr.bf16.mxu0 0
    %1279 = vmatpush1.bf16.msra.mxu0 0
    %1280 = vmatprep.subr.bf16.mxu0 0
    %1281 = vmatpush1.bf16.msra.mxu0 0
    %1282 = vmatprep.subr.bf16.mxu0 0
    %1283 = vmatpush1.bf16.msra.mxu0 0
    %1284 = vmatprep.subr.bf16.mxu0 0
    %1285 = vmatpush1.bf16.msra.mxu0 0
    %1286 = vmatprep.subr.bf16.mxu0 0
    %1287 = vmatpush1.bf16.msra.mxu0 0
    %1288 = vmatprep.mubr.bf16.mxu0 0
    %1289 = vmatmul.mubr.bf16.gmra.mrb[0].mxu0 %v1248
    %v1290 = vpop.f32.mrb[0].mxu0
    %v1291 = vadd.f32 0.0, %v1290
    %v1292 = vpop.f32.mrb[0].mxu0
    %v1293 = vadd.f32 0.0, %v1292
    %v1294 = vpop.f32.mrb[0].mxu0
    %v1295 = vpop.f32.mrb[0].mxu0
    %1296 = vdwg.mxu0
    %1297 = vmatprep.subr.bf16.mxu0 %v487
    %1298 = vmatpush1.bf16.msra.mxu0 %v486
    %1299 = vmatprep.subr.bf16.mxu0 %v491
    %1300 = vmatpush1.bf16.msra.mxu0 %v490
    %1301 = vmatprep.subr.bf16.mxu0 %v495
    %1302 = vmatpush1.bf16.msra.mxu0 %v494
    %1303 = vmatprep.subr.bf16.mxu0 %v499
    %1304 = vmatpush1.bf16.msra.mxu0 %v498
    %1305 = vmatprep.subr.bf16.mxu0 %v503
    %1306 = vmatpush1.bf16.msra.mxu0 %v502
    %1307 = vmatprep.subr.bf16.mxu0 %v507
    %1308 = vmatpush1.bf16.msra.mxu0 %v506
    %1309 = vmatprep.subr.bf16.mxu0 %v511
    %1310 = vmatpush1.bf16.msra.mxu0 %v510
    %1311 = vmatprep.subr.bf16.mxu0 %v515
    %1312 = vmatpush1.bf16.msra.mxu0 %v514
    %1313 = vmatprep.subr.bf16.mxu0 0
    %1314 = vmatpush1.bf16.msra.mxu0 0
    %1315 = vmatprep.subr.bf16.mxu0 0
    %1316 = vmatpush1.bf16.msra.mxu0 0
    %1317 = vmatprep.subr.bf16.mxu0 0
    %1318 = vmatpush1.bf16.msra.mxu0 0
    %1319 = vmatprep.subr.bf16.mxu0 0
    %1320 = vmatpush1.bf16.msra.mxu0 0
    %1321 = vmatprep.subr.bf16.mxu0 0
    %1322 = vmatpush1.bf16.msra.mxu0 0
    %1323 = vmatprep.subr.bf16.mxu0 0
    %1324 = vmatpush1.bf16.msra.mxu0 0
    %1325 = vmatprep.subr.bf16.mxu0 0
    %1326 = vmatpush1.bf16.msra.mxu0 0
    %1327 = vmatprep.subr.bf16.mxu0 0
    %1328 = vmatpush1.bf16.msra.mxu0 0
    %1329 = vmatprep.mubr.bf16.mxu0 0
    %1330 = vmatmul.mubr.bf16.gmra.mrb[0].mxu0 %v1248
    %v1331 = vpop.f32.mrb[0].mxu0
    %v1332 = vadd.f32 0.0, %v1331
    %v1333 = vpop.f32.mrb[0].mxu0
    %v1334 = vadd.f32 0.0, %v1333
    %v1335 = vpop.f32.mrb[0].mxu0
    %v1336 = vpop.f32.mrb[0].mxu0
    %1337 = vdwg.mxu0
    %v1338 = vadd.f32 %v1252, %v1291
    %v1339 = vadd.f32 %v1253, %v1293
    %v1340 = vadd.f32 %v1254, %v1332
    %v1341 = vadd.f32 %v1255, %v1334
    %v1342 = vxor.u32 %v1338, 2147483648
    %v1343 = vmul.f32 %v1342, 1.442695
    %v1344 = vpow.pop %v1343
    %v1345 = vadd.f32 %v1344, 1.0
    %v1346 = vrcp.pop %v1345
    %v1347 = vmul.f32 1.0, %v1346
    %v1348 = vxor.u32 %v1339, 2147483648
    %v1349 = vmul.f32 %v1348, 1.442695
    %v1350 = vpow.pop %v1349
    %v1351 = vadd.f32 %v1350, 1.0
    %v1352 = vrcp.pop %v1351
    %v1353 = vmul.f32 1.0, %v1352
    %v1354 = vtanh.pop %v1340
    %v1355 = vxor.u32 %v1341, 2147483648
    %v1356 = vmul.f32 %v1355, 1.442695
    %v1357 = vpow.pop %v1356
    %v1358 = vadd.f32 %v1357, 1.0
    %v1359 = vrcp.pop %v1358
    %v1360 = vmul.f32 1.0, %v1359
    %v1361 = vmul.f32 %v1353, %v1245
    %v1362 = vmul.f32 %v1347, %v1354
    %v1363 = vadd.f32 %v1361, %v1362
    %v1364 = vtanh.pop %v1363
    %v1365 = vmul.f32 %v1360, %v1364
    %v1366 = vpack.c.bf16 %v1365, %v1365
    %s1367 = smul.u32 7, 4
    %s1368 = smul.addr %s1367, 8
    %s1369 = scalar_lea.vmem [#allocation4], %s1368
    %v1370 = vld [vmem:[%s1369] sm:$0xff]
    %v1371 = vld [vmem:[%s1369 + $0x8] sm:$0xff]
    %v1372 = vld [vmem:[%s1369 + $0x10] sm:$0xff]
    %v1373 = vld [vmem:[%s1369 + $0x18] sm:$0xff]
    %1374 = vmatprep.subr.bf16.mxu0 %v485
    %1375 = vmatpush1.bf16.msra.mxu0 %v484
    %1376 = vmatprep.subr.bf16.mxu0 %v489
    %1377 = vmatpush1.bf16.msra.mxu0 %v488
    %1378 = vmatprep.subr.bf16.mxu0 %v493
    %1379 = vmatpush1.bf16.msra.mxu0 %v492
    %1380 = vmatprep.subr.bf16.mxu0 %v497
    %1381 = vmatpush1.bf16.msra.mxu0 %v496
    %1382 = vmatprep.subr.bf16.mxu0 %v501
    %1383 = vmatpush1.bf16.msra.mxu0 %v500
    %1384 = vmatprep.subr.bf16.mxu0 %v505
    %1385 = vmatpush1.bf16.msra.mxu0 %v504
    %1386 = vmatprep.subr.bf16.mxu0 %v509
    %1387 = vmatpush1.bf16.msra.mxu0 %v508
    %1388 = vmatprep.subr.bf16.mxu0 %v513
    %1389 = vmatpush1.bf16.msra.mxu0 %v512
    %1390 = vmatprep.subr.bf16.mxu0 0
    %1391 = vmatpush1.bf16.msra.mxu0 0
    %1392 = vmatprep.subr.bf16.mxu0 0
    %1393 = vmatpush1.bf16.msra.mxu0 0
    %1394 = vmatprep.subr.bf16.mxu0 0
    %1395 = vmatpush1.bf16.msra.mxu0 0
    %1396 = vmatprep.subr.bf16.mxu0 0
    %1397 = vmatpush1.bf16.msra.mxu0 0
    %1398 = vmatprep.subr.bf16.mxu0 0
    %1399 = vmatpush1.bf16.msra.mxu0 0
    %1400 = vmatprep.subr.bf16.mxu0 0
    %1401 = vmatpush1.bf16.msra.mxu0 0
    %1402 = vmatprep.subr.bf16.mxu0 0
    %1403 = vmatpush1.bf16.msra.mxu0 0
    %1404 = vmatprep.subr.bf16.mxu0 0
    %1405 = vmatpush1.bf16.msra.mxu0 0
    %1406 = vmatprep.mubr.bf16.mxu0 0
    %1407 = vmatmul.mubr.bf16.gmra.mrb[0].mxu0 %v1366
    %v1408 = vpop.f32.mrb[0].mxu0
    %v1409 = vadd.f32 0.0, %v1408
    %v1410 = vpop.f32.mrb[0].mxu0
    %v1411 = vadd.f32 0.0, %v1410
    %v1412 = vpop.f32.mrb[0].mxu0
    %v1413 = vpop.f32.mrb[0].mxu0
    %1414 = vdwg.mxu0
    %1415 = vmatprep.subr.bf16.mxu0 %v487
    %1416 = vmatpush1.bf16.msra.mxu0 %v486
    %1417 = vmatprep.subr.bf16.mxu0 %v491
    %1418 = vmatpush1.bf16.msra.mxu0 %v490
    %1419 = vmatprep.subr.bf16.mxu0 %v495
    %1420 = vmatpush1.bf16.msra.mxu0 %v494
    %1421 = vmatprep.subr.bf16.mxu0 %v499
    %1422 = vmatpush1.bf16.msra.mxu0 %v498
    %1423 = vmatprep.subr.bf16.mxu0 %v503
    %1424 = vmatpush1.bf16.msra.mxu0 %v502
    %1425 = vmatprep.subr.bf16.mxu0 %v507
    %1426 = vmatpush1.bf16.msra.mxu0 %v506
    %1427 = vmatprep.subr.bf16.mxu0 %v511
    %1428 = vmatpush1.bf16.msra.mxu0 %v510
    %1429 = vmatprep.subr.bf16.mxu0 %v515
    %1430 = vmatpush1.bf16.msra.mxu0 %v514
    %1431 = vmatprep.subr.bf16.mxu0 0
    %1432 = vmatpush1.bf16.msra.mxu0 0
    %1433 = vmatprep.subr.bf16.mxu0 0
    %1434 = vmatpush1.bf16.msra.mxu0 0
    %1435 = vmatprep.subr.bf16.mxu0 0
    %1436 = vmatpush1.bf16.msra.mxu0 0
    %1437 = vmatprep.subr.bf16.mxu0 0
    %1438 = vmatpush1.bf16.msra.mxu0 0
    %1439 = vmatprep.subr.bf16.mxu0 0
    %1440 = vmatpush1.bf16.msra.mxu0 0
    %1441 = vmatprep.subr.bf16.mxu0 0
    %1442 = vmatpush1.bf16.msra.mxu0 0
    %1443 = vmatprep.subr.bf16.mxu0 0
    %1444 = vmatpush1.bf16.msra.mxu0 0
    %1445 = vmatprep.subr.bf16.mxu0 0
    %1446 = vmatpush1.bf16.msra.mxu0 0
    %1447 = vmatprep.mubr.bf16.mxu0 0
    %1448 = vmatmul.mubr.bf16.gmra.mrb[0].mxu0 %v1366
    %v1449 = vpop.f32.mrb[0].mxu0
    %v1450 = vadd.f32 0.0, %v1449
    %v1451 = vpop.f32.mrb[0].mxu0
    %v1452 = vadd.f32 0.0, %v1451
    %v1453 = vpop.f32.mrb[0].mxu0
    %v1454 = vpop.f32.mrb[0].mxu0
    %1455 = vdwg.mxu0
    %v1456 = vadd.f32 %v1370, %v1409
    %v1457 = vadd.f32 %v1371, %v1411
    %v1458 = vadd.f32 %v1372, %v1450
    %v1459 = vadd.f32 %v1373, %v1452
    %v1460 = vxor.u32 %v1456, 2147483648
    %v1461 = vmul.f32 %v1460, 1.442695
    %v1462 = vpow.pop %v1461
    %v1463 = vadd.f32 %v1462, 1.0
    %v1464 = vrcp.pop %v1463
    %v1465 = vmul.f32 1.0, %v1464
    %v1466 = vxor.u32 %v1457, 2147483648
    %v1467 = vmul.f32 %v1466, 1.442695
    %v1468 = vpow.pop %v1467
    %v1469 = vadd.f32 %v1468, 1.0
    %v1470 = vrcp.pop %v1469
    %v1471 = vmul.f32 1.0, %v1470
    %v1472 = vtanh.pop %v1458
    %v1473 = vxor.u32 %v1459, 2147483648
    %v1474 = vmul.f32 %v1473, 1.442695
    %v1475 = vpow.pop %v1474
    %v1476 = vadd.f32 %v1475, 1.0
    %v1477 = vrcp.pop %v1476
    %v1478 = vmul.f32 1.0, %v1477
    %v1479 = vmul.f32 %v1471, %v1363
    %v1480 = vmul.f32 %v1465, %v1472
    %v1481 = vadd.f32 %v1479, %v1480
    %v1482 = vtanh.pop %v1481
    %v1483 = vmul.f32 %v1478, %v1482
    %1484 = vst [vmem:[#allocation2] sm:$0xff] %v1483
    %1485 = vst [vmem:[#allocation3] sm:$0xff] %v1481
    // Predicated region
    $region38: #{tpu_custom_call.1} parent=1 // pred_check
      %p1486 = pneg %p75
    $region39: #{tpu_custom_call.1} parent=1 // pred_check_branch
      %1488 = sbr.rel (%p1486) target = $region41
    $region40: #{tpu_custom_call.1} parent=1 // pred_region
      %v1489 = vpack.c.bf16 %v1483, %v1483
      %v1490 = vld [vmem:[#allocation8] sm:$0xf]
      %v1491 = vld [vmem:[#allocation8 + $0x4] sm:$0xf]
      %v1492 = vld [vmem:[#allocation8 + $0x8] sm:$0xf]
      %v1493 = vld [vmem:[#allocation8 + $0xc] sm:$0xf]
      %v1494 = vld [vmem:[#allocation8 + $0x10] sm:$0xf]
      %v1495 = vld [vmem:[#allocation8 + $0x14] sm:$0xf]
      %v1496 = vld [vmem:[#allocation8 + $0x18] sm:$0xf]
      %v1497 = vld [vmem:[#allocation8 + $0x1c] sm:$0xf]
      %v1498 = vld [vmem:[#allocation8 + $0x20] sm:$0xf]
      %v1499 = vld [vmem:[#allocation8 + $0x24] sm:$0xf]
      %v1500 = vld [vmem:[#allocation8 + $0x28] sm:$0xf]
      %v1501 = vld [vmem:[#allocation8 + $0x2c] sm:$0xf]
      %v1502 = vld [vmem:[#allocation8 + $0x30] sm:$0xf]
      %v1503 = vld [vmem:[#allocation8 + $0x34] sm:$0xf]
      %v1504 = vld [vmem:[#allocation8 + $0x38] sm:$0xf]
      %v1505 = vld [vmem:[#allocation8 + $0x3c] sm:$0xf]
      %v1506 = vld [vmem:[%s5] sm:$0x1]
      %v1508 = vlaneseq
      %v1509 = vshrl.u32 %v1508, 7
      %v1510 = vsub.s32 0, %v1509
      %v1511 = vrot.slane %v1506, %v1510
      %v1529 = vunpack.c.l.b16 %v1490
      %v1530 = vunpack.c.l.b16 %v1491
      %v1531 = vunpack.c.l.b16 %v1492
      %v1532 = vunpack.c.l.b16 %v1493
      %v1533 = vunpack.c.l.b16 %v1494
      %v1534 = vunpack.c.l.b16 %v1495
      %v1535 = vunpack.c.l.b16 %v1496
      %v1536 = vunpack.c.l.b16 %v1497
      %v1537 = vunpack.c.l.b16 %v1498
      %v1538 = vunpack.c.l.b16 %v1499
      %v1539 = vunpack.c.l.b16 %v1500
      %v1540 = vunpack.c.l.b16 %v1501
      %v1541 = vunpack.c.l.b16 %v1502
      %v1542 = vunpack.c.l.b16 %v1503
      %v1543 = vunpack.c.l.b16 %v1504
      %v1544 = vunpack.c.l.b16 %v1505
      %v1545 = vpack.c.b16 %v1530, %v1529
      %v1546 = vpack.c.b16 %v1532, %v1531
      %v1547 = vpack.c.b16 %v1534, %v1533
      %v1548 = vpack.c.b16 %v1536, %v1535
      %v1549 = vpack.c.b16 %v1538, %v1537
      %v1550 = vpack.c.b16 %v1540, %v1539
      %v1551 = vpack.c.b16 %v1542, %v1541
      %v1552 = vpack.c.b16 %v1544, %v1543
      %1561 = vmatprep.subr.bf16.mxu0 0
      %1562 = vmatpush1.bf16.msra.mxu0 %v1545
      %1563 = vmatprep.subr.bf16.mxu0 0
      %1564 = vmatpush1.bf16.msra.mxu0 %v1546
      %1565 = vmatprep.subr.bf16.mxu0 0
      %1566 = vmatpush1.bf16.msra.mxu0 %v1547
      %1567 = vmatprep.subr.bf16.mxu0 0
      %1568 = vmatpush1.bf16.msra.mxu0 %v1548
      %1569 = vmatprep.subr.bf16.mxu0 0
      %1570 = vmatpush1.bf16.msra.mxu0 %v1549
      %1571 = vmatprep.subr.bf16.mxu0 0
      %1572 = vmatpush1.bf16.msra.mxu0 %v1550
      %1573 = vmatprep.subr.bf16.mxu0 0
      %1574 = vmatpush1.bf16.msra.mxu0 %v1551
      %1575 = vmatprep.subr.bf16.mxu0 0
      %1576 = vmatpush1.bf16.msra.mxu0 %v1552
      %1577 = vmatprep.subr.bf16.mxu0 0
      %1578 = vmatpush1.bf16.msra.mxu0 0
      %1579 = vmatprep.subr.bf16.mxu0 0
      %1580 = vmatpush1.bf16.msra.mxu0 0
      %1581 = vmatprep.subr.bf16.mxu0 0
      %1582 = vmatpush1.bf16.msra.mxu0 0
      %1583 = vmatprep.subr.bf16.mxu0 0
      %1584 = vmatpush1.bf16.msra.mxu0 0
      %1585 = vmatprep.subr.bf16.mxu0 0
      %1586 = vmatpush1.bf16.msra.mxu0 0
      %1587 = vmatprep.subr.bf16.mxu0 0
      %1588 = vmatpush1.bf16.msra.mxu0 0
      %1589 = vmatprep.subr.bf16.mxu0 0
      %1590 = vmatpush1.bf16.msra.mxu0 0
      %1591 = vmatprep.subr.bf16.mxu0 0
      %1592 = vmatpush1.bf16.msra.mxu0 0
      %1593 = vmatprep.mubr.bf16.mxu0 0
      %1594 = vmatmul.mubr.bf16.gmra.mrb[0].mxu0 %v1489
      %v1595 = vpop.f32.mrb[0].mxu0
      %v1596 = vadd.f32 %v1511, %v1595
      %v1597 = vpop.f32.mrb[0].mxu0
      %v1598 = vpop.f32.mrb[0].mxu0
      %v1599 = vpop.f32.mrb[0].mxu0
      %1600 = vdwg.mxu0
      %1601 = vst [vmem:[#allocation10] sm:$0xff] %v1596
    $region41: #{tpu_custom_call.1} parent=1 // pred_fallthru
      _
    // Predicated region
    $region42: #{tpu_custom_call.1} parent=1 // pred_check
      _
    $region43: #{tpu_custom_call.1} parent=1 // pred_check_branch
      %1603 = sbr.rel (0) target = $region45
    $region44: #{tpu_custom_call.1} parent=1 // pred_region
      %s1605 = ssub.s32 128, 128
      %1606 = vsyncadd [#allocation7], %s1605
      %s1608 = sshll.u32 [#allocation10], 4
      %s1609 = int_to_ptr.vmem [resolvable:$true] %s1608
      %1611 = dma.vmem_to_hbm [thread:$0]  %s1609, 128, %s6, [#allocation7]
    $region45: #{tpu_custom_call.1} parent=1 // pred_fallthru
      _
    // Predicated region
    $region46: #{tpu_custom_call.1} parent=1 // pred_check
      _
    $region47: #{tpu_custom_call.1} parent=1 // pred_check_branch
      %1613 = sbr.rel (0) target = $region49
    $region48: #{tpu_custom_call.1} parent=1 // pred_region
      %1614 = dma.done [#allocation7], 128
    $region49: #{tpu_custom_call.1} parent=1 // pred_fallthru
      _
    %1615 = vsyncpa [#allocation6], 1
    %1616 = vsyncpa [#allocation9], 1
    %1617 = vsyncpa [#allocation7], 1

</llo_original>
